<compile_context>
chip_gen: v7x
topology: tpu7x:2x2x1
jax: 0.10.0
libtpu: 0.0.40
codegen_flags: <defaults>
</compile_context>

<pallas_src>
import functools

import jax
import jax.numpy as jnp
from jax.experimental import pallas as pl
from jax.experimental.pallas import tpu as pltpu

P_DROP = 0.1
KEEP_SCALE = 1.0 / (1.0 - P_DROP)
# drop if uniform_u32 < P_DROP * 2^32  (keep with probability 1 - p)
DROP_THRESHOLD_U32 = int(P_DROP * (2 ** 32))


def dropout_add_kernel(x_ref, y_ref, bits_ref, o_ref):
    # x_ref:    tile of x428 (tensor dropout is applied to)
    # y_ref:    tile of x399 (residual)
    # bits_ref: tile of uint32 random bits (one per element)
    # o_ref:    output tile
    keep = (bits_ref[...] >= jnp.uint32(DROP_THRESHOLD_U32)).astype(x_ref.dtype)
    o_ref[...] = y_ref[...] + x_ref[...] * (keep * jnp.float32(KEEP_SCALE))


@functools.partial(jax.jit, static_argnames=("num_row_blocks",))
def dropout_add(x428, x399, bits, *, num_row_blocks=2):
    # x428, x399: (B, S, H) float32; bits: (B, S, H) uint32
    B, S, H = x428.shape
    rows = B * S
    x2 = x428.reshape(rows, H)
    y2 = x399.reshape(rows, H)
    b2 = bits.reshape(rows, H)

    assert H % 128 == 0, "hidden dim must be a multiple of 128 (lane width)"
    assert rows % num_row_blocks == 0
    row_tile = rows // num_row_blocks
    assert row_tile % 8 == 0, "row tile must be a multiple of 8 (sublane width)"

    out = pl.pallas_call(
        dropout_add_kernel,
        out_shape=jax.ShapeDtypeStruct((rows, H), x428.dtype),
        grid=(num_row_blocks,),
        in_specs=[
            pl.BlockSpec((row_tile, H), lambda i: (i, 0)),
            pl.BlockSpec((row_tile, H), lambda i: (i, 0)),
            pl.BlockSpec((row_tile, H), lambda i: (i, 0)),
        ],
        out_specs=pl.BlockSpec((row_tile, H), lambda i: (i, 0)),
        # Residual (y2, input index 1) aliases the output buffer.
        input_output_aliases={1: 0},
        compiler_params=pltpu.CompilerParams(
            # Blocks are fully independent -> megacore sharding on v7x.
            dimension_semantics=("parallel",),
        ),
    )(x2, y2, b2)
    return out.reshape(B, S, H)


if __name__ == "__main__":
    key = jax.random.PRNGKey(0)
    k1, k2, k3 = jax.random.split(key, 3)

    # Shapes from the module: (1, 384, 768)
    B, S, H = 1, 384, 768
    x428 = jax.random.normal(k1, (B, S, H), dtype=jnp.float32)
    x399 = jax.random.normal(k2, (B, S, H), dtype=jnp.float32)
    bits = jax.random.bits(k3, (B, S, H), dtype=jnp.uint32)

    out = dropout_add(x428, x399, bits)
    jax.block_until_ready(out)

    # Sanity checks: shape/dtype, exact reference, dropout statistics.
    assert out.shape == (B, S, H) and out.dtype == jnp.float32

    keep = (bits >= jnp.uint32(DROP_THRESHOLD_U32)).astype(jnp.float32)
    ref = x399 + x428 * (keep * jnp.float32(KEEP_SCALE))
    max_err = float(jnp.max(jnp.abs(out - ref)))
    drop_frac = float(1.0 - jnp.mean(keep))

    assert max_err < 1e-5, f"mismatch vs reference: {max_err}"
    assert 0.05 < drop_frac < 0.15, f"drop fraction off: {drop_frac}"

    print("KERNEL_OK")
</pallas_src>

<mosaic_0001>
module attributes {stable_mosaic.version = 11 : i64} {
  func.func @dropout_add_kernel(%arg0: i32, %arg1: memref<192x768xf32, #tpu.memory_space<vmem>>, %arg2: memref<192x768xf32, #tpu.memory_space<vmem>>, %arg3: memref<192x768xi32, #tpu.memory_space<vmem>>, %arg4: memref<192x768xf32, #tpu.memory_space<vmem>>) attributes {dimension_semantics = [#tpu.dimension_semantics<parallel>], iteration_bounds = array<i64: 2>, scalar_prefetch = 0 : i64, scratch_operands = 0 : i64, tpu.core_type = #tpu.core_type<tc>, window_params = [{transform_indices = @transform_0, window_bounds = array<i64: 192, 768>}, {transform_indices = @transform_1, window_bounds = array<i64: 192, 768>}, {transform_indices = @transform_2, window_bounds = array<i64: 192, 768>}, {transform_indices = @transform_3, window_bounds = array<i64: 192, 768>}]} {
    %c0 = arith.constant 0 : index
    %c0_0 = arith.constant 0 : index
    %0 = vector.load %arg3[%c0, %c0_0] : memref<192x768xi32, #tpu.memory_space<vmem>>, vector<192x768xi32>
    %c429496729_i32 = arith.constant 429496729 : i32
    %1 = vector.broadcast %c429496729_i32 : i32 to vector<192x768xi32>
    %2 = arith.cmpi uge, %0, %1 : vector<192x768xi32>
    %3 = arith.extui %2 : vector<192x768xi1> to vector<192x768xi32>
    %4 = arith.sitofp %3 : vector<192x768xi32> to vector<192x768xf32>
    %c0_1 = arith.constant 0 : index
    %c0_2 = arith.constant 0 : index
    %5 = vector.load %arg2[%c0_1, %c0_2] : memref<192x768xf32, #tpu.memory_space<vmem>>, vector<192x768xf32>
    %c0_3 = arith.constant 0 : index
    %c0_4 = arith.constant 0 : index
    %6 = vector.load %arg1[%c0_3, %c0_4] : memref<192x768xf32, #tpu.memory_space<vmem>>, vector<192x768xf32>
    %cst = arith.constant 1.11111116 : f32
    %7 = vector.broadcast %cst : f32 to vector<192x768xf32>
    %8 = arith.mulf %4, %7 : vector<192x768xf32>
    %9 = arith.mulf %6, %8 : vector<192x768xf32>
    %10 = arith.addf %5, %9 : vector<192x768xf32>
    %c0_5 = arith.constant 0 : index
    %c0_6 = arith.constant 0 : index
    %11 = vector.load %arg4[%c0_5, %c0_6] : memref<192x768xf32, #tpu.memory_space<vmem>>, vector<192x768xf32>
    tpu.vector_store %arg4[%c0_5, %c0_6], %10 {strides = array<i32>} : memref<192x768xf32, #tpu.memory_space<vmem>>, vector<192x768xf32>,
    return
  }
  func.func @transform_0(%arg0: i32) -> (i32, i32) {
    %c0_i32 = arith.constant 0 : i32
    %c0_i32_0 = arith.constant 0 : i32
    return %arg0, %c0_i32 : i32, i32
  }
  func.func @transform_1(%arg0: i32) -> (i32, i32) {
    %c0_i32 = arith.constant 0 : i32
    %c0_i32_0 = arith.constant 0 : i32
    return %arg0, %c0_i32 : i32, i32
  }
  func.func @transform_2(%arg0: i32) -> (i32, i32) {
    %c0_i32 = arith.constant 0 : i32
    %c0_i32_0 = arith.constant 0 : i32
    return %arg0, %c0_i32 : i32, i32
  }
  func.func @transform_3(%arg0: i32) -> (i32, i32) {
    %c0_i32 = arith.constant 0 : i32
    %c0_i32_0 = arith.constant 0 : i32
    return %arg0, %c0_i32 : i32, i32
  }
}

</mosaic_0001>

<llo_original>
// kernel: dropout_add.1
$region0: #{dropout_add.1}
  #allocation0 [shape = 'u32[]', space=smem, size = 0x4, offset = 0x4, fixed_abs, tag = 'smem constant byte address 0x4 - core index']
  #allocation1 [shape = 'u32[144,128]{1,0:T(1,128)}', space=vmem, size = 0x12000, scoped, tag = 'internal scratch']
  %s0 = inlined_call_operand.vmem [shape: f32[384,768], index: 0, kind: input, shape index: {}]
  %s1 = inlined_call_operand.vmem [shape: f32[384,768], index: 1, kind: input, shape index: {}, may-alias: {1,3}]
  %s2 = inlined_call_operand.hbm [shape: u32[384,768], index: 2, kind: input, shape index: {}]
  %s3 = inlined_call_operand.vmem [shape: f32[384,768], index: 3, kind: output, shape index: {}, may-alias: {1,3}]
  %s4 = sld [smem:[#allocation0]]
  $region49: #{dropout_add.1} parent=0
    _
  %s6 = ssub.s32 1, %s4
  %s7 = scalar_select 0, %s6, %s4
  $region1: #{dropout_add.1} parent=0
    #allocation2 [shape = 'u8[1179648]{0}', space=vmem, size = 0x120000, scoped, tag = 'input window, operand 2']
    #allocation3 [shape = 's32[2]{0}', space=sflag, size = 0x8, scoped, tag = 'scoped memory for dropout_add.1']
    %8 = vsyncpa [#allocation3], 0
    %s9 = scalar_lea.sflag [#allocation3], 1
    %10 = vsyncpa %s9, 0
    loop: start=0, step=1, limit=4
    $region2: #{dropout_add.1} parent=1 // loop_pre_header
      _
    $region3: #{dropout_add.1} parent=1 // loop_header
      %s12 = sphi 0, %s16
      %p13 = scmp.ge.s32.totalorder %s12, 4
      %s22 = sphi 0, %s24
      %s25 = sphi 0, %s22
      %s26 = sphi 0, %s25
      %s42 = sphi 0, %s26
      %s48 = sphi 0, %s50
      %s51 = sphi 0, %s48
      %s52 = sphi 0, %s51
      %s68 = sphi 0, %s52
      %s74 = sphi 0, %s76
      %s77 = sphi 0, %s74
      %s78 = sphi 0, %s77
      %s94 = sphi 0, %s78
      %s100 = sphi 0, %s102
      %s103 = sphi 0, %s100
      %s104 = sphi 0, %s103
      %s120 = sphi 0, %s104
    $region4: #{dropout_add.1} parent=1 // loop_header_branch
      %15 = sbr.rel (%p13) target = $region8
    $region5: #{dropout_add.1} parent=1 // loop_body
      %s17 = ssub.s32 %s12, 1
      %s18 = ssub.s32 %s12, 2
      %s19 = sadd.s32 %s12, 1
      %s20 = ssub.s32 %s12, %s19
      %p21 = scmp.eq.s32.totalorder %s20, 0
      %s23 = sadd.s32 %s22, 1
      %s24 = scalar_select %p21, %s22, %s23
      %p27 = pneg %p21
      %p28 = scmp.eq.s32.totalorder %s12, 1
      %p29 = por %p27, %p28
      %p30 = scmp.ne.s32.totalorder %s22, %s25
      %p31 = scmp.eq.s32.totalorder %s12, 0
      %p32 = por %p30, %p31
      %p33 = scmp.ne.s32.totalorder %s22, %s25
      %p34 = scmp.eq.s32.totalorder %s17, 1
      %p35 = por %p33, %p34
      %p36 = scmp.ne.s32.totalorder %s25, %s26
      %p37 = scmp.eq.s32.totalorder %s17, 0
      %p38 = por %p36, %p37
      %p39 = scmp.ne.s32.totalorder %s25, %s26
      %p40 = scmp.eq.s32.totalorder %s18, 1
      %p41 = por %p39, %p40
      %p43 = scmp.ne.s32.totalorder %s26, %s42
      %p44 = scmp.eq.s32.totalorder %s18, 0
      %p45 = por %p43, %p44
      %s46 = ssub.s32 %s12, %s19
      %p47 = scmp.eq.s32.totalorder %s46, 0
      %s49 = sadd.s32 %s48, 1
      %s50 = scalar_select %p47, %s48, %s49
      %p53 = pneg %p47
      %p54 = scmp.eq.s32.totalorder %s12, 1
      %p55 = por %p53, %p54
      %p56 = scmp.ne.s32.totalorder %s48, %s51
      %p57 = scmp.eq.s32.totalorder %s12, 0
      %p58 = por %p56, %p57
      %p59 = scmp.ne.s32.totalorder %s48, %s51
      %p60 = scmp.eq.s32.totalorder %s17, 1
      %p61 = por %p59, %p60
      %p62 = scmp.ne.s32.totalorder %s51, %s52
      %p63 = scmp.eq.s32.totalorder %s17, 0
      %p64 = por %p62, %p63
      %p65 = scmp.ne.s32.totalorder %s51, %s52
      %p66 = scmp.eq.s32.totalorder %s18, 1
      %p67 = por %p65, %p66
      %p69 = scmp.ne.s32.totalorder %s52, %s68
      %p70 = scmp.eq.s32.totalorder %s18, 0
      %p71 = por %p69, %p70
      %s72 = ssub.s32 %s12, %s19
      %p73 = scmp.eq.s32.totalorder %s72, 0
      %s75 = sadd.s32 %s74, 1
      %s76 = scalar_select %p73, %s74, %s75
      %p79 = pneg %p73
      %p80 = scmp.eq.s32.totalorder %s12, 1
      %p81 = por %p79, %p80
      %p82 = scmp.ne.s32.totalorder %s74, %s77
      %p83 = scmp.eq.s32.totalorder %s12, 0
      %p84 = por %p82, %p83
      %p85 = scmp.ne.s32.totalorder %s74, %s77
      %p86 = scmp.eq.s32.totalorder %s17, 1
      %p87 = por %p85, %p86
      %p88 = scmp.ne.s32.totalorder %s77, %s78
      %p89 = scmp.eq.s32.totalorder %s17, 0
      %p90 = por %p88, %p89
      %p91 = scmp.ne.s32.totalorder %s77, %s78
      %p92 = scmp.eq.s32.totalorder %s18, 1
      %p93 = por %p91, %p92
      %p95 = scmp.ne.s32.totalorder %s78, %s94
      %p96 = scmp.eq.s32.totalorder %s18, 0
      %p97 = por %p95, %p96
      %s98 = ssub.s32 %s12, %s19
      %p99 = scmp.eq.s32.totalorder %s98, 0
      %s101 = sadd.s32 %s100, 1
      %s102 = scalar_select %p99, %s100, %s101
      %p105 = pneg %p99
      %p106 = scmp.eq.s32.totalorder %s12, 1
      %p107 = por %p105, %p106
      %p108 = scmp.ne.s32.totalorder %s100, %s103
      %p109 = scmp.eq.s32.totalorder %s12, 0
      %p110 = por %p108, %p109
      %p111 = scmp.ne.s32.totalorder %s100, %s103
      %p112 = scmp.eq.s32.totalorder %s17, 1
      %p113 = por %p111, %p112
      %p114 = scmp.ne.s32.totalorder %s103, %s104
      %p115 = scmp.eq.s32.totalorder %s17, 0
      %p116 = por %p114, %p115
      %p117 = scmp.ne.s32.totalorder %s103, %s104
      %p118 = scmp.eq.s32.totalorder %s18, 1
      %p119 = por %p117, %p118
      %p121 = scmp.ne.s32.totalorder %s104, %s120
      %p122 = scmp.eq.s32.totalorder %s18, 0
      %p123 = por %p121, %p122
      %p124 = scmp.le.s32.totalorder 1, %s12
      %p125 = scmp.lt.s32.totalorder %s12, 3
      %p126 = pnand %p124, %p125
      %p127 = pneg %p126
      // Predicated region
      $region9: #{dropout_add.1} parent=5 // pred_check
        _
      $region10: #{dropout_add.1} parent=5 // pred_check_branch
        %129 = sbr.rel (%p126) target = $region12
      $region11: #{dropout_add.1} parent=5 // pred_region
        %s130 = ssub.s32 %s12, 1
      $region12: #{dropout_add.1} parent=5 // pred_fallthru
        _
      %p131 = scmp.lt.s32.totalorder %s12, 2
      // Predicated region
      $region13: #{dropout_add.1} parent=5 // pred_check
        %p132 = pneg %p131
      $region14: #{dropout_add.1} parent=5 // pred_check_branch
        %134 = sbr.rel (%p132) target = $region16
      $region15: #{dropout_add.1} parent=5 // pred_region
        // Predicated region
        $region17: #{dropout_add.1} parent=15 // pred_check
          %p135 = pneg %p32
        $region18: #{dropout_add.1} parent=15 // pred_check_branch
          %137 = sbr.rel (%p135) target = $region20
        $region19: #{dropout_add.1} parent=15 // pred_region
          %s138 = smul.u32 24, %s12
          %p139 = scmp.lt.s32.totalorder %s138, 47
          %s140 = scalar_select %p139, %s138, 47
          %s141 = smul.addr %s140, 6
          %s142 = smul.addr %s141, 8
          %s143 = scalar_lea.vmem %s0, %s142
          %s144 = smul.u32 24, %s12
        $region20: #{dropout_add.1} parent=15 // pred_fallthru
          _
        // Predicated region
        $region21: #{dropout_add.1} parent=15 // pred_check
          %p145 = pneg %p58
        $region22: #{dropout_add.1} parent=15 // pred_check_branch
          %147 = sbr.rel (%p145) target = $region24
        $region23: #{dropout_add.1} parent=15 // pred_region
          %s148 = smul.u32 24, %s12
          %p149 = scmp.lt.s32.totalorder %s148, 47
          %s150 = scalar_select %p149, %s148, 47
          %s151 = smul.addr %s150, 6
          %s152 = smul.addr %s151, 8
          %s153 = scalar_lea.vmem %s1, %s152
          %s154 = smul.u32 24, %s12
        $region24: #{dropout_add.1} parent=15 // pred_fallthru
          _
        // Predicated region
        $region25: #{dropout_add.1} parent=15 // pred_check
          %p155 = pneg %p84
        $region26: #{dropout_add.1} parent=15 // pred_check_branch
          %157 = sbr.rel (%p155) target = $region28
        $region27: #{dropout_add.1} parent=15 // pred_region
          %s158 = sand.u32 %s74, 1
          %s159 = scalar_lea.sflag [#allocation3], %s158
          %s160 = sand.u32 %s74, 1
          %s161 = smul.addr %s160, 1152
          %s162 = scalar_lea.vmem [#allocation2], %s161
          %s163 = smul.u32 24, %s12
          %s165 = ssub.s32 18432, 18432
          %166 = vsyncadd %s159, %s165
          %s167 = smul.addr %s163, 6
          %s168 = smul.addr %s167, 128
          %s169 = scalar_lea.hbm %s2, %s168
          %s170 = sshll.u32 %s162, 4
          %s171 = int_to_ptr.vmem [resolvable:$true] %s170
          %176 = dma.hbm_to_vmem [thread:$0]  %s169, 18432, %s171, %s159, 768, 768, 48
        $region28: #{dropout_add.1} parent=15 // pred_fallthru
          _
      $region16: #{dropout_add.1} parent=5 // pred_fallthru
        _
      %p177 = scmp.le.s32.totalorder 1, %s12
      %p178 = scmp.lt.s32.totalorder %s12, 3
      %p179 = pnand %p177, %p178
      %p180 = pneg %p179
      // Predicated region
      $region29: #{dropout_add.1} parent=5 // pred_check
        _
      $region30: #{dropout_add.1} parent=5 // pred_check_branch
        %182 = sbr.rel (%p179) target = $region32
      $region31: #{dropout_add.1} parent=5 // pred_region
        %s183 = ssub.s32 %s12, 1
        %s184 = sand.u32 %s77, 1
        %s185 = scalar_lea.sflag [#allocation3], %s184
        %s186 = sand.u32 %s77, 1
        %s187 = smul.addr %s186, 1152
        %s188 = scalar_lea.vmem [#allocation2], %s187
        // Predicated region
        $region33: #{dropout_add.1} parent=31 // pred_check
          %p189 = pneg %p90
        $region34: #{dropout_add.1} parent=31 // pred_check_branch
          %191 = sbr.rel (%p189) target = $region36
        $region35: #{dropout_add.1} parent=31 // pred_region
          %192 = dma.done %s185, 18432
        $region36: #{dropout_add.1} parent=31 // pred_fallthru
          _
        %s193 = smul.u32 24, %s17
        %p194 = scmp.lt.s32.totalorder %s193, 47
        %s195 = scalar_select %p194, %s193, 47
        %s196 = smul.addr %s195, 6
        %s197 = smul.addr %s196, 8
        %s198 = scalar_lea.vmem %s0, %s197
        %p199 = pneg %p38
        %p200 = pneg %p35
        %s201 = smul.u32 24, %s17
        %p202 = scmp.lt.s32.totalorder %s201, 47
        %s203 = scalar_select %p202, %s201, 47
        %s204 = smul.addr %s203, 6
        %s205 = smul.addr %s204, 8
        %s206 = scalar_lea.vmem %s1, %s205
        %p207 = pneg %p64
        %p208 = pneg %p61
        %s209 = sand.u32 %s77, 1
        %s210 = scalar_lea.sflag [#allocation3], %s209
        %s211 = sand.u32 %s77, 1
        %s212 = smul.addr %s211, 1152
        %s213 = scalar_lea.vmem [#allocation2], %s212
        %p214 = pneg %p90
        %p215 = pneg %p87
        %p216 = pneg %p116
        %p217 = pneg %p113
        %s218 = smul.u32 24, %s17
        %p219 = scmp.lt.s32.totalorder %s218, 47
        %s220 = scalar_select %p219, %s218, 47
        %s221 = smul.addr %s220, 6
        %s222 = smul.addr %s221, 8
        %s223 = scalar_lea.vmem %s3, %s222
        %s224 = smul.u32 24, %s17
        %p225 = scmp.lt.s32.totalorder %s224, 47
        %s226 = scalar_select %p225, %s224, 47
        %s227 = smul.addr %s226, 6
        %s228 = smul.addr %s227, 8
        %s229 = scalar_lea.vmem %s0, %s228
        %s230 = smul.u32 24, %s17
        %s231 = smul.u32 24, %s17
        %p232 = scmp.lt.s32.totalorder %s231, 47
        %s233 = scalar_select %p232, %s231, 47
        %s234 = smul.addr %s233, 6
        %s235 = smul.addr %s234, 8
        %s236 = scalar_lea.vmem %s1, %s235
        %s237 = smul.u32 24, %s17
        %s238 = smul.u32 24, %s17
        %s239 = smul.u32 24, %s17
        %p240 = scmp.lt.s32.totalorder %s239, 47
        %s241 = scalar_select %p240, %s239, 47
        %s242 = smul.addr %s241, 6
        %s243 = smul.addr %s242, 8
        %s244 = scalar_lea.vmem %s3, %s243
        %s245 = smul.u32 24, %s17
        %v246 = vld [vmem:[%s188] sm:$0xff]
        %v247 = vld [vmem:[%s188 + $0x8] sm:$0xff]
        %v248 = vld [vmem:[%s188 + $0x10] sm:$0xff]
        %v249 = vld [vmem:[%s188 + $0x18] sm:$0xff]
        %v250 = vld [vmem:[%s188 + $0x20] sm:$0xff]
        %v251 = vld [vmem:[%s188 + $0x28] sm:$0xff]
        %v252 = vld [vmem:[%s188 + $0x30] sm:$0xff]
        %v253 = vld [vmem:[%s188 + $0x38] sm:$0xff]
        %v254 = vld [vmem:[%s188 + $0x40] sm:$0xff]
        %v255 = vld [vmem:[%s188 + $0x48] sm:$0xff]
        %v256 = vld [vmem:[%s188 + $0x50] sm:$0xff]
        %v257 = vld [vmem:[%s188 + $0x58] sm:$0xff]
        %v258 = vld [vmem:[%s188 + $0x60] sm:$0xff]
        %v259 = vld [vmem:[%s188 + $0x68] sm:$0xff]
        %v260 = vld [vmem:[%s188 + $0x70] sm:$0xff]
        %v261 = vld [vmem:[%s188 + $0x78] sm:$0xff]
        %v262 = vld [vmem:[%s188 + $0x80] sm:$0xff]
        %v263 = vld [vmem:[%s188 + $0x88] sm:$0xff]
        %v264 = vld [vmem:[%s188 + $0x90] sm:$0xff]
        %v265 = vld [vmem:[%s188 + $0x98] sm:$0xff]
        %v266 = vld [vmem:[%s188 + $0xa0] sm:$0xff]
        %v267 = vld [vmem:[%s188 + $0xa8] sm:$0xff]
        %v268 = vld [vmem:[%s188 + $0xb0] sm:$0xff]
        %v269 = vld [vmem:[%s188 + $0xb8] sm:$0xff]
        %v270 = vld [vmem:[%s188 + $0xc0] sm:$0xff]
        %v271 = vld [vmem:[%s188 + $0xc8] sm:$0xff]
        %v272 = vld [vmem:[%s188 + $0xd0] sm:$0xff]
        %v273 = vld [vmem:[%s188 + $0xd8] sm:$0xff]
        %v274 = vld [vmem:[%s188 + $0xe0] sm:$0xff]
        %v275 = vld [vmem:[%s188 + $0xe8] sm:$0xff]
        %v276 = vld [vmem:[%s188 + $0xf0] sm:$0xff]
        %v277 = vld [vmem:[%s188 + $0xf8] sm:$0xff]
        %v278 = vld [vmem:[%s188 + $0x100] sm:$0xff]
        %v279 = vld [vmem:[%s188 + $0x108] sm:$0xff]
        %v280 = vld [vmem:[%s188 + $0x110] sm:$0xff]
        %v281 = vld [vmem:[%s188 + $0x118] sm:$0xff]
        %v282 = vld [vmem:[%s188 + $0x120] sm:$0xff]
        %v283 = vld [vmem:[%s188 + $0x128] sm:$0xff]
        %v284 = vld [vmem:[%s188 + $0x130] sm:$0xff]
        %v285 = vld [vmem:[%s188 + $0x138] sm:$0xff]
        %v286 = vld [vmem:[%s188 + $0x140] sm:$0xff]
        %v287 = vld [vmem:[%s188 + $0x148] sm:$0xff]
        %v288 = vld [vmem:[%s188 + $0x150] sm:$0xff]
        %v289 = vld [vmem:[%s188 + $0x158] sm:$0xff]
        %v290 = vld [vmem:[%s188 + $0x160] sm:$0xff]
        %v291 = vld [vmem:[%s188 + $0x168] sm:$0xff]
        %v292 = vld [vmem:[%s188 + $0x170] sm:$0xff]
        %v293 = vld [vmem:[%s188 + $0x178] sm:$0xff]
        %v294 = vld [vmem:[%s188 + $0x180] sm:$0xff]
        %v295 = vld [vmem:[%s188 + $0x188] sm:$0xff]
        %v296 = vld [vmem:[%s188 + $0x190] sm:$0xff]
        %v297 = vld [vmem:[%s188 + $0x198] sm:$0xff]
        %v298 = vld [vmem:[%s188 + $0x1a0] sm:$0xff]
        %v299 = vld [vmem:[%s188 + $0x1a8] sm:$0xff]
        %v300 = vld [vmem:[%s188 + $0x1b0] sm:$0xff]
        %v301 = vld [vmem:[%s188 + $0x1b8] sm:$0xff]
        %v302 = vld [vmem:[%s188 + $0x1c0] sm:$0xff]
        %v303 = vld [vmem:[%s188 + $0x1c8] sm:$0xff]
        %v304 = vld [vmem:[%s188 + $0x1d0] sm:$0xff]
        %v305 = vld [vmem:[%s188 + $0x1d8] sm:$0xff]
        %v306 = vld [vmem:[%s188 + $0x1e0] sm:$0xff]
        %v307 = vld [vmem:[%s188 + $0x1e8] sm:$0xff]
        %v308 = vld [vmem:[%s188 + $0x1f0] sm:$0xff]
        %v309 = vld [vmem:[%s188 + $0x1f8] sm:$0xff]
        %v310 = vld [vmem:[%s188 + $0x200] sm:$0xff]
        %v311 = vld [vmem:[%s188 + $0x208] sm:$0xff]
        %v312 = vld [vmem:[%s188 + $0x210] sm:$0xff]
        %v313 = vld [vmem:[%s188 + $0x218] sm:$0xff]
        %v314 = vld [vmem:[%s188 + $0x220] sm:$0xff]
        %v315 = vld [vmem:[%s188 + $0x228] sm:$0xff]
        %v316 = vld [vmem:[%s188 + $0x230] sm:$0xff]
        %v317 = vld [vmem:[%s188 + $0x238] sm:$0xff]
        %v318 = vld [vmem:[%s188 + $0x240] sm:$0xff]
        %v319 = vld [vmem:[%s188 + $0x248] sm:$0xff]
        %v320 = vld [vmem:[%s188 + $0x250] sm:$0xff]
        %v321 = vld [vmem:[%s188 + $0x258] sm:$0xff]
        %v322 = vld [vmem:[%s188 + $0x260] sm:$0xff]
        %v323 = vld [vmem:[%s188 + $0x268] sm:$0xff]
        %v324 = vld [vmem:[%s188 + $0x270] sm:$0xff]
        %v325 = vld [vmem:[%s188 + $0x278] sm:$0xff]
        %v326 = vld [vmem:[%s188 + $0x280] sm:$0xff]
        %v327 = vld [vmem:[%s188 + $0x288] sm:$0xff]
        %v328 = vld [vmem:[%s188 + $0x290] sm:$0xff]
        %v329 = vld [vmem:[%s188 + $0x298] sm:$0xff]
        %v330 = vld [vmem:[%s188 + $0x2a0] sm:$0xff]
        %v331 = vld [vmem:[%s188 + $0x2a8] sm:$0xff]
        %v332 = vld [vmem:[%s188 + $0x2b0] sm:$0xff]
        %v333 = vld [vmem:[%s188 + $0x2b8] sm:$0xff]
        %v334 = vld [vmem:[%s188 + $0x2c0] sm:$0xff]
        %v335 = vld [vmem:[%s188 + $0x2c8] sm:$0xff]
        %v336 = vld [vmem:[%s188 + $0x2d0] sm:$0xff]
        %v337 = vld [vmem:[%s188 + $0x2d8] sm:$0xff]
        %v338 = vld [vmem:[%s188 + $0x2e0] sm:$0xff]
        %v339 = vld [vmem:[%s188 + $0x2e8] sm:$0xff]
        %v340 = vld [vmem:[%s188 + $0x2f0] sm:$0xff]
        %v341 = vld [vmem:[%s188 + $0x2f8] sm:$0xff]
        %v342 = vld [vmem:[%s188 + $0x300] sm:$0xff]
        %v343 = vld [vmem:[%s188 + $0x308] sm:$0xff]
        %v344 = vld [vmem:[%s188 + $0x310] sm:$0xff]
        %v345 = vld [vmem:[%s188 + $0x318] sm:$0xff]
        %v346 = vld [vmem:[%s188 + $0x320] sm:$0xff]
        %v347 = vld [vmem:[%s188 + $0x328] sm:$0xff]
        %v348 = vld [vmem:[%s188 + $0x330] sm:$0xff]
        %v349 = vld [vmem:[%s188 + $0x338] sm:$0xff]
        %v350 = vld [vmem:[%s188 + $0x340] sm:$0xff]
        %v351 = vld [vmem:[%s188 + $0x348] sm:$0xff]
        %v352 = vld [vmem:[%s188 + $0x350] sm:$0xff]
        %v353 = vld [vmem:[%s188 + $0x358] sm:$0xff]
        %v354 = vld [vmem:[%s188 + $0x360] sm:$0xff]
        %v355 = vld [vmem:[%s188 + $0x368] sm:$0xff]
        %v356 = vld [vmem:[%s188 + $0x370] sm:$0xff]
        %v357 = vld [vmem:[%s188 + $0x378] sm:$0xff]
        %v358 = vld [vmem:[%s188 + $0x380] sm:$0xff]
        %v359 = vld [vmem:[%s188 + $0x388] sm:$0xff]
        %v360 = vld [vmem:[%s188 + $0x390] sm:$0xff]
        %v361 = vld [vmem:[%s188 + $0x398] sm:$0xff]
        %v362 = vld [vmem:[%s188 + $0x3a0] sm:$0xff]
        %v363 = vld [vmem:[%s188 + $0x3a8] sm:$0xff]
        %v364 = vld [vmem:[%s188 + $0x3b0] sm:$0xff]
        %v365 = vld [vmem:[%s188 + $0x3b8] sm:$0xff]
        %v366 = vld [vmem:[%s188 + $0x3c0] sm:$0xff]
        %v367 = vld [vmem:[%s188 + $0x3c8] sm:$0xff]
        %v368 = vld [vmem:[%s188 + $0x3d0] sm:$0xff]
        %v369 = vld [vmem:[%s188 + $0x3d8] sm:$0xff]
        %v370 = vld [vmem:[%s188 + $0x3e0] sm:$0xff]
        %v371 = vld [vmem:[%s188 + $0x3e8] sm:$0xff]
        %v372 = vld [vmem:[%s188 + $0x3f0] sm:$0xff]
        %v373 = vld [vmem:[%s188 + $0x3f8] sm:$0xff]
        %v374 = vld [vmem:[%s188 + $0x400] sm:$0xff]
        %v375 = vld [vmem:[%s188 + $0x408] sm:$0xff]
        %v376 = vld [vmem:[%s188 + $0x410] sm:$0xff]
        %v377 = vld [vmem:[%s188 + $0x418] sm:$0xff]
        %v378 = vld [vmem:[%s188 + $0x420] sm:$0xff]
        %v379 = vld [vmem:[%s188 + $0x428] sm:$0xff]
        %v380 = vld [vmem:[%s188 + $0x430] sm:$0xff]
        %v381 = vld [vmem:[%s188 + $0x438] sm:$0xff]
        %v382 = vld [vmem:[%s188 + $0x440] sm:$0xff]
        %v383 = vld [vmem:[%s188 + $0x448] sm:$0xff]
        %v384 = vld [vmem:[%s188 + $0x450] sm:$0xff]
        %v385 = vld [vmem:[%s188 + $0x458] sm:$0xff]
        %v386 = vld [vmem:[%s188 + $0x460] sm:$0xff]
        %v387 = vld [vmem:[%s188 + $0x468] sm:$0xff]
        %v388 = vld [vmem:[%s188 + $0x470] sm:$0xff]
        %v389 = vld [vmem:[%s188 + $0x478] sm:$0xff]
        %vm390 = vcmp.ge.u32.totalorder %v246, 429496729
        %vm391 = vcmp.ge.u32.totalorder %v247, 429496729
        %vm392 = vcmp.ge.u32.totalorder %v248, 429496729
        %vm393 = vcmp.ge.u32.totalorder %v249, 429496729
        %vm394 = vcmp.ge.u32.totalorder %v250, 429496729
        %vm395 = vcmp.ge.u32.totalorder %v251, 429496729
        %vm396 = vcmp.ge.u32.totalorder %v252, 429496729
        %vm397 = vcmp.ge.u32.totalorder %v253, 429496729
        %vm398 = vcmp.ge.u32.totalorder %v254, 429496729
        %vm399 = vcmp.ge.u32.totalorder %v255, 429496729
        %vm400 = vcmp.ge.u32.totalorder %v256, 429496729
        %vm401 = vcmp.ge.u32.totalorder %v257, 429496729
        %vm402 = vcmp.ge.u32.totalorder %v258, 429496729
        %vm403 = vcmp.ge.u32.totalorder %v259, 429496729
        %vm404 = vcmp.ge.u32.totalorder %v260, 429496729
        %vm405 = vcmp.ge.u32.totalorder %v261, 429496729
        %vm406 = vcmp.ge.u32.totalorder %v262, 429496729
        %vm407 = vcmp.ge.u32.totalorder %v263, 429496729
        %vm408 = vcmp.ge.u32.totalorder %v264, 429496729
        %vm409 = vcmp.ge.u32.totalorder %v265, 429496729
        %vm410 = vcmp.ge.u32.totalorder %v266, 429496729
        %vm411 = vcmp.ge.u32.totalorder %v267, 429496729
        %vm412 = vcmp.ge.u32.totalorder %v268, 429496729
        %vm413 = vcmp.ge.u32.totalorder %v269, 429496729
        %vm414 = vcmp.ge.u32.totalorder %v270, 429496729
        %vm415 = vcmp.ge.u32.totalorder %v271, 429496729
        %vm416 = vcmp.ge.u32.totalorder %v272, 429496729
        %vm417 = vcmp.ge.u32.totalorder %v273, 429496729
        %vm418 = vcmp.ge.u32.totalorder %v274, 429496729
        %vm419 = vcmp.ge.u32.totalorder %v275, 429496729
        %vm420 = vcmp.ge.u32.totalorder %v276, 429496729
        %vm421 = vcmp.ge.u32.totalorder %v277, 429496729
        %vm422 = vcmp.ge.u32.totalorder %v278, 429496729
        %vm423 = vcmp.ge.u32.totalorder %v279, 429496729
        %vm424 = vcmp.ge.u32.totalorder %v280, 429496729
        %vm425 = vcmp.ge.u32.totalorder %v281, 429496729
        %vm426 = vcmp.ge.u32.totalorder %v282, 429496729
        %vm427 = vcmp.ge.u32.totalorder %v283, 429496729
        %vm428 = vcmp.ge.u32.totalorder %v284, 429496729
        %vm429 = vcmp.ge.u32.totalorder %v285, 429496729
        %vm430 = vcmp.ge.u32.totalorder %v286, 429496729
        %vm431 = vcmp.ge.u32.totalorder %v287, 429496729
        %vm432 = vcmp.ge.u32.totalorder %v288, 429496729
        %vm433 = vcmp.ge.u32.totalorder %v289, 429496729
        %vm434 = vcmp.ge.u32.totalorder %v290, 429496729
        %vm435 = vcmp.ge.u32.totalorder %v291, 429496729
        %vm436 = vcmp.ge.u32.totalorder %v292, 429496729
        %vm437 = vcmp.ge.u32.totalorder %v293, 429496729
        %vm438 = vcmp.ge.u32.totalorder %v294, 429496729
        %vm439 = vcmp.ge.u32.totalorder %v295, 429496729
        %vm440 = vcmp.ge.u32.totalorder %v296, 429496729
        %vm441 = vcmp.ge.u32.totalorder %v297, 429496729
        %vm442 = vcmp.ge.u32.totalorder %v298, 429496729
        %vm443 = vcmp.ge.u32.totalorder %v299, 429496729
        %vm444 = vcmp.ge.u32.totalorder %v300, 429496729
        %vm445 = vcmp.ge.u32.totalorder %v301, 429496729
        %vm446 = vcmp.ge.u32.totalorder %v302, 429496729
        %vm447 = vcmp.ge.u32.totalorder %v303, 429496729
        %vm448 = vcmp.ge.u32.totalorder %v304, 429496729
        %vm449 = vcmp.ge.u32.totalorder %v305, 429496729
        %vm450 = vcmp.ge.u32.totalorder %v306, 429496729
        %vm451 = vcmp.ge.u32.totalorder %v307, 429496729
        %vm452 = vcmp.ge.u32.totalorder %v308, 429496729
        %vm453 = vcmp.ge.u32.totalorder %v309, 429496729
        %vm454 = vcmp.ge.u32.totalorder %v310, 429496729
        %vm455 = vcmp.ge.u32.totalorder %v311, 429496729
        %vm456 = vcmp.ge.u32.totalorder %v312, 429496729
        %vm457 = vcmp.ge.u32.totalorder %v313, 429496729
        %vm458 = vcmp.ge.u32.totalorder %v314, 429496729
        %vm459 = vcmp.ge.u32.totalorder %v315, 429496729
        %vm460 = vcmp.ge.u32.totalorder %v316, 429496729
        %vm461 = vcmp.ge.u32.totalorder %v317, 429496729
        %vm462 = vcmp.ge.u32.totalorder %v318, 429496729
        %vm463 = vcmp.ge.u32.totalorder %v319, 429496729
        %vm464 = vcmp.ge.u32.totalorder %v320, 429496729
        %vm465 = vcmp.ge.u32.totalorder %v321, 429496729
        %vm466 = vcmp.ge.u32.totalorder %v322, 429496729
        %vm467 = vcmp.ge.u32.totalorder %v323, 429496729
        %vm468 = vcmp.ge.u32.totalorder %v324, 429496729
        %vm469 = vcmp.ge.u32.totalorder %v325, 429496729
        %vm470 = vcmp.ge.u32.totalorder %v326, 429496729
        %vm471 = vcmp.ge.u32.totalorder %v327, 429496729
        %vm472 = vcmp.ge.u32.totalorder %v328, 429496729
        %vm473 = vcmp.ge.u32.totalorder %v329, 429496729
        %vm474 = vcmp.ge.u32.totalorder %v330, 429496729
        %vm475 = vcmp.ge.u32.totalorder %v331, 429496729
        %vm476 = vcmp.ge.u32.totalorder %v332, 429496729
        %vm477 = vcmp.ge.u32.totalorder %v333, 429496729
        %vm478 = vcmp.ge.u32.totalorder %v334, 429496729
        %vm479 = vcmp.ge.u32.totalorder %v335, 429496729
        %vm480 = vcmp.ge.u32.totalorder %v336, 429496729
        %vm481 = vcmp.ge.u32.totalorder %v337, 429496729
        %vm482 = vcmp.ge.u32.totalorder %v338, 429496729
        %vm483 = vcmp.ge.u32.totalorder %v339, 429496729
        %vm484 = vcmp.ge.u32.totalorder %v340, 429496729
        %vm485 = vcmp.ge.u32.totalorder %v341, 429496729
        %vm486 = vcmp.ge.u32.totalorder %v342, 429496729
        %vm487 = vcmp.ge.u32.totalorder %v343, 429496729
        %vm488 = vcmp.ge.u32.totalorder %v344, 429496729
        %vm489 = vcmp.ge.u32.totalorder %v345, 429496729
        %vm490 = vcmp.ge.u32.totalorder %v346, 429496729
        %vm491 = vcmp.ge.u32.totalorder %v347, 429496729
        %vm492 = vcmp.ge.u32.totalorder %v348, 429496729
        %vm493 = vcmp.ge.u32.totalorder %v349, 429496729
        %vm494 = vcmp.ge.u32.totalorder %v350, 429496729
        %vm495 = vcmp.ge.u32.totalorder %v351, 429496729
        %vm496 = vcmp.ge.u32.totalorder %v352, 429496729
        %vm497 = vcmp.ge.u32.totalorder %v353, 429496729
        %vm498 = vcmp.ge.u32.totalorder %v354, 429496729
        %vm499 = vcmp.ge.u32.totalorder %v355, 429496729
        %vm500 = vcmp.ge.u32.totalorder %v356, 429496729
        %vm501 = vcmp.ge.u32.totalorder %v357, 429496729
        %vm502 = vcmp.ge.u32.totalorder %v358, 429496729
        %vm503 = vcmp.ge.u32.totalorder %v359, 429496729
        %vm504 = vcmp.ge.u32.totalorder %v360, 429496729
        %vm505 = vcmp.ge.u32.totalorder %v361, 429496729
        %vm506 = vcmp.ge.u32.totalorder %v362, 429496729
        %vm507 = vcmp.ge.u32.totalorder %v363, 429496729
        %vm508 = vcmp.ge.u32.totalorder %v364, 429496729
        %vm509 = vcmp.ge.u32.totalorder %v365, 429496729
        %vm510 = vcmp.ge.u32.totalorder %v366, 429496729
        %vm511 = vcmp.ge.u32.totalorder %v367, 429496729
        %vm512 = vcmp.ge.u32.totalorder %v368, 429496729
        %vm513 = vcmp.ge.u32.totalorder %v369, 429496729
        %vm514 = vcmp.ge.u32.totalorder %v370, 429496729
        %vm515 = vcmp.ge.u32.totalorder %v371, 429496729
        %vm516 = vcmp.ge.u32.totalorder %v372, 429496729
        %vm517 = vcmp.ge.u32.totalorder %v373, 429496729
        %vm518 = vcmp.ge.u32.totalorder %v374, 429496729
        %vm519 = vcmp.ge.u32.totalorder %v375, 429496729
        %vm520 = vcmp.ge.u32.totalorder %v376, 429496729
        %vm521 = vcmp.ge.u32.totalorder %v377, 429496729
        %vm522 = vcmp.ge.u32.totalorder %v378, 429496729
        %vm523 = vcmp.ge.u32.totalorder %v379, 429496729
        %vm524 = vcmp.ge.u32.totalorder %v380, 429496729
        %vm525 = vcmp.ge.u32.totalorder %v381, 429496729
        %vm526 = vcmp.ge.u32.totalorder %v382, 429496729
        %vm527 = vcmp.ge.u32.totalorder %v383, 429496729
        %vm528 = vcmp.ge.u32.totalorder %v384, 429496729
        %vm529 = vcmp.ge.u32.totalorder %v385, 429496729
        %vm530 = vcmp.ge.u32.totalorder %v386, 429496729
        %vm531 = vcmp.ge.u32.totalorder %v387, 429496729
        %vm532 = vcmp.ge.u32.totalorder %v388, 429496729
        %vm533 = vcmp.ge.u32.totalorder %v389, 429496729
        %v534 = vsel %vm390, 1, 0
        %v535 = vsel %vm391, 1, 0
        %v536 = vsel %vm392, 1, 0
        %v537 = vsel %vm393, 1, 0
        %v538 = vsel %vm394, 1, 0
        %v539 = vsel %vm395, 1, 0
        %v540 = vsel %vm396, 1, 0
        %v541 = vsel %vm397, 1, 0
        %v542 = vsel %vm398, 1, 0
        %v543 = vsel %vm399, 1, 0
        %v544 = vsel %vm400, 1, 0
        %v545 = vsel %vm401, 1, 0
        %v546 = vsel %vm402, 1, 0
        %v547 = vsel %vm403, 1, 0
        %v548 = vsel %vm404, 1, 0
        %v549 = vsel %vm405, 1, 0
        %v550 = vsel %vm406, 1, 0
        %v551 = vsel %vm407, 1, 0
        %v552 = vsel %vm408, 1, 0
        %v553 = vsel %vm409, 1, 0
        %v554 = vsel %vm410, 1, 0
        %v555 = vsel %vm411, 1, 0
        %v556 = vsel %vm412, 1, 0
        %v557 = vsel %vm413, 1, 0
        %v558 = vsel %vm414, 1, 0
        %v559 = vsel %vm415, 1, 0
        %v560 = vsel %vm416, 1, 0
        %v561 = vsel %vm417, 1, 0
        %v562 = vsel %vm418, 1, 0
        %v563 = vsel %vm419, 1, 0
        %v564 = vsel %vm420, 1, 0
        %v565 = vsel %vm421, 1, 0
        %v566 = vsel %vm422, 1, 0
        %v567 = vsel %vm423, 1, 0
        %v568 = vsel %vm424, 1, 0
        %v569 = vsel %vm425, 1, 0
        %v570 = vsel %vm426, 1, 0
        %v571 = vsel %vm427, 1, 0
        %v572 = vsel %vm428, 1, 0
        %v573 = vsel %vm429, 1, 0
        %v574 = vsel %vm430, 1, 0
        %v575 = vsel %vm431, 1, 0
        %v576 = vsel %vm432, 1, 0
        %v577 = vsel %vm433, 1, 0
        %v578 = vsel %vm434, 1, 0
        %v579 = vsel %vm435, 1, 0
        %v580 = vsel %vm436, 1, 0
        %v581 = vsel %vm437, 1, 0
        %v582 = vsel %vm438, 1, 0
        %v583 = vsel %vm439, 1, 0
        %v584 = vsel %vm440, 1, 0
        %v585 = vsel %vm441, 1, 0
        %v586 = vsel %vm442, 1, 0
        %v587 = vsel %vm443, 1, 0
        %v588 = vsel %vm444, 1, 0
        %v589 = vsel %vm445, 1, 0
        %v590 = vsel %vm446, 1, 0
        %v591 = vsel %vm447, 1, 0
        %v592 = vsel %vm448, 1, 0
        %v593 = vsel %vm449, 1, 0
        %v594 = vsel %vm450, 1, 0
        %v595 = vsel %vm451, 1, 0
        %v596 = vsel %vm452, 1, 0
        %v597 = vsel %vm453, 1, 0
        %v598 = vsel %vm454, 1, 0
        %v599 = vsel %vm455, 1, 0
        %v600 = vsel %vm456, 1, 0
        %v601 = vsel %vm457, 1, 0
        %v602 = vsel %vm458, 1, 0
        %v603 = vsel %vm459, 1, 0
        %v604 = vsel %vm460, 1, 0
        %v605 = vsel %vm461, 1, 0
        %v606 = vsel %vm462, 1, 0
        %v607 = vsel %vm463, 1, 0
        %v608 = vsel %vm464, 1, 0
        %v609 = vsel %vm465, 1, 0
        %v610 = vsel %vm466, 1, 0
        %v611 = vsel %vm467, 1, 0
        %v612 = vsel %vm468, 1, 0
        %v613 = vsel %vm469, 1, 0
        %v614 = vsel %vm470, 1, 0
        %v615 = vsel %vm471, 1, 0
        %v616 = vsel %vm472, 1, 0
        %v617 = vsel %vm473, 1, 0
        %v618 = vsel %vm474, 1, 0
        %v619 = vsel %vm475, 1, 0
        %v620 = vsel %vm476, 1, 0
        %v621 = vsel %vm477, 1, 0
        %v622 = vsel %vm478, 1, 0
        %v623 = vsel %vm479, 1, 0
        %v624 = vsel %vm480, 1, 0
        %v625 = vsel %vm481, 1, 0
        %v626 = vsel %vm482, 1, 0
        %v627 = vsel %vm483, 1, 0
        %v628 = vsel %vm484, 1, 0
        %v629 = vsel %vm485, 1, 0
        %v630 = vsel %vm486, 1, 0
        %v631 = vsel %vm487, 1, 0
        %v632 = vsel %vm488, 1, 0
        %v633 = vsel %vm489, 1, 0
        %v634 = vsel %vm490, 1, 0
        %v635 = vsel %vm491, 1, 0
        %v636 = vsel %vm492, 1, 0
        %v637 = vsel %vm493, 1, 0
        %v638 = vsel %vm494, 1, 0
        %v639 = vsel %vm495, 1, 0
        %v640 = vsel %vm496, 1, 0
        %v641 = vsel %vm497, 1, 0
        %v642 = vsel %vm498, 1, 0
        %v643 = vsel %vm499, 1, 0
        %v644 = vsel %vm500, 1, 0
        %v645 = vsel %vm501, 1, 0
        %v646 = vsel %vm502, 1, 0
        %v647 = vsel %vm503, 1, 0
        %v648 = vsel %vm504, 1, 0
        %v649 = vsel %vm505, 1, 0
        %v650 = vsel %vm506, 1, 0
        %v651 = vsel %vm507, 1, 0
        %v652 = vsel %vm508, 1, 0
        %v653 = vsel %vm509, 1, 0
        %v654 = vsel %vm510, 1, 0
        %v655 = vsel %vm511, 1, 0
        %v656 = vsel %vm512, 1, 0
        %v657 = vsel %vm513, 1, 0
        %v658 = vsel %vm514, 1, 0
        %v659 = vsel %vm515, 1, 0
        %v660 = vsel %vm516, 1, 0
        %v661 = vsel %vm517, 1, 0
        %v662 = vsel %vm518, 1, 0
        %v663 = vsel %vm519, 1, 0
        %v664 = vsel %vm520, 1, 0
        %v665 = vsel %vm521, 1, 0
        %v666 = vsel %vm522, 1, 0
        %v667 = vsel %vm523, 1, 0
        %v668 = vsel %vm524, 1, 0
        %v669 = vsel %vm525, 1, 0
        %v670 = vsel %vm526, 1, 0
        %v671 = vsel %vm527, 1, 0
        %v672 = vsel %vm528, 1, 0
        %v673 = vsel %vm529, 1, 0
        %v674 = vsel %vm530, 1, 0
        %v675 = vsel %vm531, 1, 0
        %v676 = vsel %vm532, 1, 0
        %v677 = vsel %vm533, 1, 0
        %v678 = vcvt.s32.f32 %v534
        %v679 = vcvt.s32.f32 %v535
        %v680 = vcvt.s32.f32 %v536
        %v681 = vcvt.s32.f32 %v537
        %v682 = vcvt.s32.f32 %v538
        %v683 = vcvt.s32.f32 %v539
        %v684 = vcvt.s32.f32 %v540
        %v685 = vcvt.s32.f32 %v541
        %v686 = vcvt.s32.f32 %v542
        %v687 = vcvt.s32.f32 %v543
        %v688 = vcvt.s32.f32 %v544
        %v689 = vcvt.s32.f32 %v545
        %v690 = vcvt.s32.f32 %v546
        %v691 = vcvt.s32.f32 %v547
        %v692 = vcvt.s32.f32 %v548
        %v693 = vcvt.s32.f32 %v549
        %v694 = vcvt.s32.f32 %v550
        %v695 = vcvt.s32.f32 %v551
        %v696 = vcvt.s32.f32 %v552
        %v697 = vcvt.s32.f32 %v553
        %v698 = vcvt.s32.f32 %v554
        %v699 = vcvt.s32.f32 %v555
        %v700 = vcvt.s32.f32 %v556
        %v701 = vcvt.s32.f32 %v557
        %v702 = vcvt.s32.f32 %v558
        %v703 = vcvt.s32.f32 %v559
        %v704 = vcvt.s32.f32 %v560
        %v705 = vcvt.s32.f32 %v561
        %v706 = vcvt.s32.f32 %v562
        %v707 = vcvt.s32.f32 %v563
        %v708 = vcvt.s32.f32 %v564
        %v709 = vcvt.s32.f32 %v565
        %v710 = vcvt.s32.f32 %v566
        %v711 = vcvt.s32.f32 %v567
        %v712 = vcvt.s32.f32 %v568
        %v713 = vcvt.s32.f32 %v569
        %v714 = vcvt.s32.f32 %v570
        %v715 = vcvt.s32.f32 %v571
        %v716 = vcvt.s32.f32 %v572
        %v717 = vcvt.s32.f32 %v573
        %v718 = vcvt.s32.f32 %v574
        %v719 = vcvt.s32.f32 %v575
        %v720 = vcvt.s32.f32 %v576
        %v721 = vcvt.s32.f32 %v577
        %v722 = vcvt.s32.f32 %v578
        %v723 = vcvt.s32.f32 %v579
        %v724 = vcvt.s32.f32 %v580
        %v725 = vcvt.s32.f32 %v581
        %v726 = vcvt.s32.f32 %v582
        %v727 = vcvt.s32.f32 %v583
        %v728 = vcvt.s32.f32 %v584
        %v729 = vcvt.s32.f32 %v585
        %v730 = vcvt.s32.f32 %v586
        %v731 = vcvt.s32.f32 %v587
        %v732 = vcvt.s32.f32 %v588
        %v733 = vcvt.s32.f32 %v589
        %v734 = vcvt.s32.f32 %v590
        %v735 = vcvt.s32.f32 %v591
        %v736 = vcvt.s32.f32 %v592
        %v737 = vcvt.s32.f32 %v593
        %v738 = vcvt.s32.f32 %v594
        %v739 = vcvt.s32.f32 %v595
        %v740 = vcvt.s32.f32 %v596
        %v741 = vcvt.s32.f32 %v597
        %v742 = vcvt.s32.f32 %v598
        %v743 = vcvt.s32.f32 %v599
        %v744 = vcvt.s32.f32 %v600
        %v745 = vcvt.s32.f32 %v601
        %v746 = vcvt.s32.f32 %v602
        %v747 = vcvt.s32.f32 %v603
        %v748 = vcvt.s32.f32 %v604
        %v749 = vcvt.s32.f32 %v605
        %v750 = vcvt.s32.f32 %v606
        %v751 = vcvt.s32.f32 %v607
        %v752 = vcvt.s32.f32 %v608
        %v753 = vcvt.s32.f32 %v609
        %v754 = vcvt.s32.f32 %v610
        %v755 = vcvt.s32.f32 %v611
        %v756 = vcvt.s32.f32 %v612
        %v757 = vcvt.s32.f32 %v613
        %v758 = vcvt.s32.f32 %v614
        %v759 = vcvt.s32.f32 %v615
        %v760 = vcvt.s32.f32 %v616
        %v761 = vcvt.s32.f32 %v617
        %v762 = vcvt.s32.f32 %v618
        %v763 = vcvt.s32.f32 %v619
        %v764 = vcvt.s32.f32 %v620
        %v765 = vcvt.s32.f32 %v621
        %v766 = vcvt.s32.f32 %v622
        %v767 = vcvt.s32.f32 %v623
        %v768 = vcvt.s32.f32 %v624
        %v769 = vcvt.s32.f32 %v625
        %v770 = vcvt.s32.f32 %v626
        %v771 = vcvt.s32.f32 %v627
        %v772 = vcvt.s32.f32 %v628
        %v773 = vcvt.s32.f32 %v629
        %v774 = vcvt.s32.f32 %v630
        %v775 = vcvt.s32.f32 %v631
        %v776 = vcvt.s32.f32 %v632
        %v777 = vcvt.s32.f32 %v633
        %v778 = vcvt.s32.f32 %v634
        %v779 = vcvt.s32.f32 %v635
        %v780 = vcvt.s32.f32 %v636
        %v781 = vcvt.s32.f32 %v637
        %v782 = vcvt.s32.f32 %v638
        %v783 = vcvt.s32.f32 %v639
        %v784 = vcvt.s32.f32 %v640
        %v785 = vcvt.s32.f32 %v641
        %v786 = vcvt.s32.f32 %v642
        %v787 = vcvt.s32.f32 %v643
        %v788 = vcvt.s32.f32 %v644
        %v789 = vcvt.s32.f32 %v645
        %v790 = vcvt.s32.f32 %v646
        %v791 = vcvt.s32.f32 %v647
        %v792 = vcvt.s32.f32 %v648
        %v793 = vcvt.s32.f32 %v649
        %v794 = vcvt.s32.f32 %v650
        %v795 = vcvt.s32.f32 %v651
        %v796 = vcvt.s32.f32 %v652
        %v797 = vcvt.s32.f32 %v653
        %v798 = vcvt.s32.f32 %v654
        %v799 = vcvt.s32.f32 %v655
        %v800 = vcvt.s32.f32 %v656
        %v801 = vcvt.s32.f32 %v657
        %v802 = vcvt.s32.f32 %v658
        %v803 = vcvt.s32.f32 %v659
        %v804 = vcvt.s32.f32 %v660
        %v805 = vcvt.s32.f32 %v661
        %v806 = vcvt.s32.f32 %v662
        %v807 = vcvt.s32.f32 %v663
        %v808 = vcvt.s32.f32 %v664
        %v809 = vcvt.s32.f32 %v665
        %v810 = vcvt.s32.f32 %v666
        %v811 = vcvt.s32.f32 %v667
        %v812 = vcvt.s32.f32 %v668
        %v813 = vcvt.s32.f32 %v669
        %v814 = vcvt.s32.f32 %v670
        %v815 = vcvt.s32.f32 %v671
        %v816 = vcvt.s32.f32 %v672
        %v817 = vcvt.s32.f32 %v673
        %v818 = vcvt.s32.f32 %v674
        %v819 = vcvt.s32.f32 %v675
        %v820 = vcvt.s32.f32 %v676
        %v821 = vcvt.s32.f32 %v677
        %v822 = vld [vmem:[%s236] sm:$0xff]
        %v823 = vld [vmem:[%s236 + $0x8] sm:$0xff]
        %v824 = vld [vmem:[%s236 + $0x10] sm:$0xff]
        %v825 = vld [vmem:[%s236 + $0x18] sm:$0xff]
        %v826 = vld [vmem:[%s236 + $0x20] sm:$0xff]
        %v827 = vld [vmem:[%s236 + $0x28] sm:$0xff]
        %v828 = vld [vmem:[%s236 + $0x30] sm:$0xff]
        %v829 = vld [vmem:[%s236 + $0x38] sm:$0xff]
        %v830 = vld [vmem:[%s236 + $0x40] sm:$0xff]
        %v831 = vld [vmem:[%s236 + $0x48] sm:$0xff]
        %v832 = vld [vmem:[%s236 + $0x50] sm:$0xff]
        %v833 = vld [vmem:[%s236 + $0x58] sm:$0xff]
        %v834 = vld [vmem:[%s236 + $0x60] sm:$0xff]
        %v835 = vld [vmem:[%s236 + $0x68] sm:$0xff]
        %v836 = vld [vmem:[%s236 + $0x70] sm:$0xff]
        %v837 = vld [vmem:[%s236 + $0x78] sm:$0xff]
        %v838 = vld [vmem:[%s236 + $0x80] sm:$0xff]
        %v839 = vld [vmem:[%s236 + $0x88] sm:$0xff]
        %v840 = vld [vmem:[%s236 + $0x90] sm:$0xff]
        %v841 = vld [vmem:[%s236 + $0x98] sm:$0xff]
        %v842 = vld [vmem:[%s236 + $0xa0] sm:$0xff]
        %v843 = vld [vmem:[%s236 + $0xa8] sm:$0xff]
        %v844 = vld [vmem:[%s236 + $0xb0] sm:$0xff]
        %v845 = vld [vmem:[%s236 + $0xb8] sm:$0xff]
        %v846 = vld [vmem:[%s236 + $0xc0] sm:$0xff]
        %v847 = vld [vmem:[%s236 + $0xc8] sm:$0xff]
        %v848 = vld [vmem:[%s236 + $0xd0] sm:$0xff]
        %v849 = vld [vmem:[%s236 + $0xd8] sm:$0xff]
        %v850 = vld [vmem:[%s236 + $0xe0] sm:$0xff]
        %v851 = vld [vmem:[%s236 + $0xe8] sm:$0xff]
        %v852 = vld [vmem:[%s236 + $0xf0] sm:$0xff]
        %v853 = vld [vmem:[%s236 + $0xf8] sm:$0xff]
        %v854 = vld [vmem:[%s236 + $0x100] sm:$0xff]
        %v855 = vld [vmem:[%s236 + $0x108] sm:$0xff]
        %v856 = vld [vmem:[%s236 + $0x110] sm:$0xff]
        %v857 = vld [vmem:[%s236 + $0x118] sm:$0xff]
        %v858 = vld [vmem:[%s236 + $0x120] sm:$0xff]
        %v859 = vld [vmem:[%s236 + $0x128] sm:$0xff]
        %v860 = vld [vmem:[%s236 + $0x130] sm:$0xff]
        %v861 = vld [vmem:[%s236 + $0x138] sm:$0xff]
        %v862 = vld [vmem:[%s236 + $0x140] sm:$0xff]
        %v863 = vld [vmem:[%s236 + $0x148] sm:$0xff]
        %v864 = vld [vmem:[%s236 + $0x150] sm:$0xff]
        %v865 = vld [vmem:[%s236 + $0x158] sm:$0xff]
        %v866 = vld [vmem:[%s236 + $0x160] sm:$0xff]
        %v867 = vld [vmem:[%s236 + $0x168] sm:$0xff]
        %v868 = vld [vmem:[%s236 + $0x170] sm:$0xff]
        %v869 = vld [vmem:[%s236 + $0x178] sm:$0xff]
        %v870 = vld [vmem:[%s236 + $0x180] sm:$0xff]
        %v871 = vld [vmem:[%s236 + $0x188] sm:$0xff]
        %v872 = vld [vmem:[%s236 + $0x190] sm:$0xff]
        %v873 = vld [vmem:[%s236 + $0x198] sm:$0xff]
        %v874 = vld [vmem:[%s236 + $0x1a0] sm:$0xff]
        %v875 = vld [vmem:[%s236 + $0x1a8] sm:$0xff]
        %v876 = vld [vmem:[%s236 + $0x1b0] sm:$0xff]
        %v877 = vld [vmem:[%s236 + $0x1b8] sm:$0xff]
        %v878 = vld [vmem:[%s236 + $0x1c0] sm:$0xff]
        %v879 = vld [vmem:[%s236 + $0x1c8] sm:$0xff]
        %v880 = vld [vmem:[%s236 + $0x1d0] sm:$0xff]
        %v881 = vld [vmem:[%s236 + $0x1d8] sm:$0xff]
        %v882 = vld [vmem:[%s236 + $0x1e0] sm:$0xff]
        %v883 = vld [vmem:[%s236 + $0x1e8] sm:$0xff]
        %v884 = vld [vmem:[%s236 + $0x1f0] sm:$0xff]
        %v885 = vld [vmem:[%s236 + $0x1f8] sm:$0xff]
        %v886 = vld [vmem:[%s236 + $0x200] sm:$0xff]
        %v887 = vld [vmem:[%s236 + $0x208] sm:$0xff]
        %v888 = vld [vmem:[%s236 + $0x210] sm:$0xff]
        %v889 = vld [vmem:[%s236 + $0x218] sm:$0xff]
        %v890 = vld [vmem:[%s236 + $0x220] sm:$0xff]
        %v891 = vld [vmem:[%s236 + $0x228] sm:$0xff]
        %v892 = vld [vmem:[%s236 + $0x230] sm:$0xff]
        %v893 = vld [vmem:[%s236 + $0x238] sm:$0xff]
        %v894 = vld [vmem:[%s236 + $0x240] sm:$0xff]
        %v895 = vld [vmem:[%s236 + $0x248] sm:$0xff]
        %v896 = vld [vmem:[%s236 + $0x250] sm:$0xff]
        %v897 = vld [vmem:[%s236 + $0x258] sm:$0xff]
        %v898 = vld [vmem:[%s236 + $0x260] sm:$0xff]
        %v899 = vld [vmem:[%s236 + $0x268] sm:$0xff]
        %v900 = vld [vmem:[%s236 + $0x270] sm:$0xff]
        %v901 = vld [vmem:[%s236 + $0x278] sm:$0xff]
        %v902 = vld [vmem:[%s236 + $0x280] sm:$0xff]
        %v903 = vld [vmem:[%s236 + $0x288] sm:$0xff]
        %v904 = vld [vmem:[%s236 + $0x290] sm:$0xff]
        %v905 = vld [vmem:[%s236 + $0x298] sm:$0xff]
        %v906 = vld [vmem:[%s236 + $0x2a0] sm:$0xff]
        %v907 = vld [vmem:[%s236 + $0x2a8] sm:$0xff]
        %v908 = vld [vmem:[%s236 + $0x2b0] sm:$0xff]
        %v909 = vld [vmem:[%s236 + $0x2b8] sm:$0xff]
        %v910 = vld [vmem:[%s236 + $0x2c0] sm:$0xff]
        %v911 = vld [vmem:[%s236 + $0x2c8] sm:$0xff]
        %v912 = vld [vmem:[%s236 + $0x2d0] sm:$0xff]
        %v913 = vld [vmem:[%s236 + $0x2d8] sm:$0xff]
        %v914 = vld [vmem:[%s236 + $0x2e0] sm:$0xff]
        %v915 = vld [vmem:[%s236 + $0x2e8] sm:$0xff]
        %v916 = vld [vmem:[%s236 + $0x2f0] sm:$0xff]
        %v917 = vld [vmem:[%s236 + $0x2f8] sm:$0xff]
        %v918 = vld [vmem:[%s236 + $0x300] sm:$0xff]
        %v919 = vld [vmem:[%s236 + $0x308] sm:$0xff]
        %v920 = vld [vmem:[%s236 + $0x310] sm:$0xff]
        %v921 = vld [vmem:[%s236 + $0x318] sm:$0xff]
        %v922 = vld [vmem:[%s236 + $0x320] sm:$0xff]
        %v923 = vld [vmem:[%s236 + $0x328] sm:$0xff]
        %v924 = vld [vmem:[%s236 + $0x330] sm:$0xff]
        %v925 = vld [vmem:[%s236 + $0x338] sm:$0xff]
        %v926 = vld [vmem:[%s236 + $0x340] sm:$0xff]
        %v927 = vld [vmem:[%s236 + $0x348] sm:$0xff]
        %v928 = vld [vmem:[%s236 + $0x350] sm:$0xff]
        %v929 = vld [vmem:[%s236 + $0x358] sm:$0xff]
        %v930 = vld [vmem:[%s236 + $0x360] sm:$0xff]
        %v931 = vld [vmem:[%s236 + $0x368] sm:$0xff]
        %v932 = vld [vmem:[%s236 + $0x370] sm:$0xff]
        %v933 = vld [vmem:[%s236 + $0x378] sm:$0xff]
        %v934 = vld [vmem:[%s236 + $0x380] sm:$0xff]
        %v935 = vld [vmem:[%s236 + $0x388] sm:$0xff]
        %v936 = vld [vmem:[%s236 + $0x390] sm:$0xff]
        %v937 = vld [vmem:[%s236 + $0x398] sm:$0xff]
        %v938 = vld [vmem:[%s236 + $0x3a0] sm:$0xff]
        %v939 = vld [vmem:[%s236 + $0x3a8] sm:$0xff]
        %v940 = vld [vmem:[%s236 + $0x3b0] sm:$0xff]
        %v941 = vld [vmem:[%s236 + $0x3b8] sm:$0xff]
        %v942 = vld [vmem:[%s236 + $0x3c0] sm:$0xff]
        %v943 = vld [vmem:[%s236 + $0x3c8] sm:$0xff]
        %v944 = vld [vmem:[%s236 + $0x3d0] sm:$0xff]
        %v945 = vld [vmem:[%s236 + $0x3d8] sm:$0xff]
        %v946 = vld [vmem:[%s236 + $0x3e0] sm:$0xff]
        %v947 = vld [vmem:[%s236 + $0x3e8] sm:$0xff]
        %v948 = vld [vmem:[%s236 + $0x3f0] sm:$0xff]
        %v949 = vld [vmem:[%s236 + $0x3f8] sm:$0xff]
        %v950 = vld [vmem:[%s236 + $0x400] sm:$0xff]
        %v951 = vld [vmem:[%s236 + $0x408] sm:$0xff]
        %v952 = vld [vmem:[%s236 + $0x410] sm:$0xff]
        %v953 = vld [vmem:[%s236 + $0x418] sm:$0xff]
        %v954 = vld [vmem:[%s236 + $0x420] sm:$0xff]
        %v955 = vld [vmem:[%s236 + $0x428] sm:$0xff]
        %v956 = vld [vmem:[%s236 + $0x430] sm:$0xff]
        %v957 = vld [vmem:[%s236 + $0x438] sm:$0xff]
        %v958 = vld [vmem:[%s236 + $0x440] sm:$0xff]
        %v959 = vld [vmem:[%s236 + $0x448] sm:$0xff]
        %v960 = vld [vmem:[%s236 + $0x450] sm:$0xff]
        %v961 = vld [vmem:[%s236 + $0x458] sm:$0xff]
        %v962 = vld [vmem:[%s236 + $0x460] sm:$0xff]
        %v963 = vld [vmem:[%s236 + $0x468] sm:$0xff]
        %v964 = vld [vmem:[%s236 + $0x470] sm:$0xff]
        %v965 = vld [vmem:[%s236 + $0x478] sm:$0xff]
        %v966 = vld [vmem:[%s229] sm:$0xff]
        %v967 = vld [vmem:[%s229 + $0x8] sm:$0xff]
        %v968 = vld [vmem:[%s229 + $0x10] sm:$0xff]
        %v969 = vld [vmem:[%s229 + $0x18] sm:$0xff]
        %v970 = vld [vmem:[%s229 + $0x20] sm:$0xff]
        %v971 = vld [vmem:[%s229 + $0x28] sm:$0xff]
        %v972 = vld [vmem:[%s229 + $0x30] sm:$0xff]
        %v973 = vld [vmem:[%s229 + $0x38] sm:$0xff]
        %v974 = vld [vmem:[%s229 + $0x40] sm:$0xff]
        %v975 = vld [vmem:[%s229 + $0x48] sm:$0xff]
        %v976 = vld [vmem:[%s229 + $0x50] sm:$0xff]
        %v977 = vld [vmem:[%s229 + $0x58] sm:$0xff]
        %v978 = vld [vmem:[%s229 + $0x60] sm:$0xff]
        %v979 = vld [vmem:[%s229 + $0x68] sm:$0xff]
        %v980 = vld [vmem:[%s229 + $0x70] sm:$0xff]
        %v981 = vld [vmem:[%s229 + $0x78] sm:$0xff]
        %v982 = vld [vmem:[%s229 + $0x80] sm:$0xff]
        %v983 = vld [vmem:[%s229 + $0x88] sm:$0xff]
        %v984 = vld [vmem:[%s229 + $0x90] sm:$0xff]
        %v985 = vld [vmem:[%s229 + $0x98] sm:$0xff]
        %v986 = vld [vmem:[%s229 + $0xa0] sm:$0xff]
        %v987 = vld [vmem:[%s229 + $0xa8] sm:$0xff]
        %v988 = vld [vmem:[%s229 + $0xb0] sm:$0xff]
        %v989 = vld [vmem:[%s229 + $0xb8] sm:$0xff]
        %v990 = vld [vmem:[%s229 + $0xc0] sm:$0xff]
        %v991 = vld [vmem:[%s229 + $0xc8] sm:$0xff]
        %v992 = vld [vmem:[%s229 + $0xd0] sm:$0xff]
        %v993 = vld [vmem:[%s229 + $0xd8] sm:$0xff]
        %v994 = vld [vmem:[%s229 + $0xe0] sm:$0xff]
        %v995 = vld [vmem:[%s229 + $0xe8] sm:$0xff]
        %v996 = vld [vmem:[%s229 + $0xf0] sm:$0xff]
        %v997 = vld [vmem:[%s229 + $0xf8] sm:$0xff]
        %v998 = vld [vmem:[%s229 + $0x100] sm:$0xff]
        %v999 = vld [vmem:[%s229 + $0x108] sm:$0xff]
        %v1000 = vld [vmem:[%s229 + $0x110] sm:$0xff]
        %v1001 = vld [vmem:[%s229 + $0x118] sm:$0xff]
        %v1002 = vld [vmem:[%s229 + $0x120] sm:$0xff]
        %v1003 = vld [vmem:[%s229 + $0x128] sm:$0xff]
        %v1004 = vld [vmem:[%s229 + $0x130] sm:$0xff]
        %v1005 = vld [vmem:[%s229 + $0x138] sm:$0xff]
        %v1006 = vld [vmem:[%s229 + $0x140] sm:$0xff]
        %v1007 = vld [vmem:[%s229 + $0x148] sm:$0xff]
        %v1008 = vld [vmem:[%s229 + $0x150] sm:$0xff]
        %v1009 = vld [vmem:[%s229 + $0x158] sm:$0xff]
        %v1010 = vld [vmem:[%s229 + $0x160] sm:$0xff]
        %v1011 = vld [vmem:[%s229 + $0x168] sm:$0xff]
        %v1012 = vld [vmem:[%s229 + $0x170] sm:$0xff]
        %v1013 = vld [vmem:[%s229 + $0x178] sm:$0xff]
        %v1014 = vld [vmem:[%s229 + $0x180] sm:$0xff]
        %v1015 = vld [vmem:[%s229 + $0x188] sm:$0xff]
        %v1016 = vld [vmem:[%s229 + $0x190] sm:$0xff]
        %v1017 = vld [vmem:[%s229 + $0x198] sm:$0xff]
        %v1018 = vld [vmem:[%s229 + $0x1a0] sm:$0xff]
        %v1019 = vld [vmem:[%s229 + $0x1a8] sm:$0xff]
        %v1020 = vld [vmem:[%s229 + $0x1b0] sm:$0xff]
        %v1021 = vld [vmem:[%s229 + $0x1b8] sm:$0xff]
        %v1022 = vld [vmem:[%s229 + $0x1c0] sm:$0xff]
        %v1023 = vld [vmem:[%s229 + $0x1c8] sm:$0xff]
        %v1024 = vld [vmem:[%s229 + $0x1d0] sm:$0xff]
        %v1025 = vld [vmem:[%s229 + $0x1d8] sm:$0xff]
        %v1026 = vld [vmem:[%s229 + $0x1e0] sm:$0xff]
        %v1027 = vld [vmem:[%s229 + $0x1e8] sm:$0xff]
        %v1028 = vld [vmem:[%s229 + $0x1f0] sm:$0xff]
        %v1029 = vld [vmem:[%s229 + $0x1f8] sm:$0xff]
        %v1030 = vld [vmem:[%s229 + $0x200] sm:$0xff]
        %v1031 = vld [vmem:[%s229 + $0x208] sm:$0xff]
        %v1032 = vld [vmem:[%s229 + $0x210] sm:$0xff]
        %v1033 = vld [vmem:[%s229 + $0x218] sm:$0xff]
        %v1034 = vld [vmem:[%s229 + $0x220] sm:$0xff]
        %v1035 = vld [vmem:[%s229 + $0x228] sm:$0xff]
        %v1036 = vld [vmem:[%s229 + $0x230] sm:$0xff]
        %v1037 = vld [vmem:[%s229 + $0x238] sm:$0xff]
        %v1038 = vld [vmem:[%s229 + $0x240] sm:$0xff]
        %v1039 = vld [vmem:[%s229 + $0x248] sm:$0xff]
        %v1040 = vld [vmem:[%s229 + $0x250] sm:$0xff]
        %v1041 = vld [vmem:[%s229 + $0x258] sm:$0xff]
        %v1042 = vld [vmem:[%s229 + $0x260] sm:$0xff]
        %v1043 = vld [vmem:[%s229 + $0x268] sm:$0xff]
        %v1044 = vld [vmem:[%s229 + $0x270] sm:$0xff]
        %v1045 = vld [vmem:[%s229 + $0x278] sm:$0xff]
        %v1046 = vld [vmem:[%s229 + $0x280] sm:$0xff]
        %v1047 = vld [vmem:[%s229 + $0x288] sm:$0xff]
        %v1048 = vld [vmem:[%s229 + $0x290] sm:$0xff]
        %v1049 = vld [vmem:[%s229 + $0x298] sm:$0xff]
        %v1050 = vld [vmem:[%s229 + $0x2a0] sm:$0xff]
        %v1051 = vld [vmem:[%s229 + $0x2a8] sm:$0xff]
        %v1052 = vld [vmem:[%s229 + $0x2b0] sm:$0xff]
        %v1053 = vld [vmem:[%s229 + $0x2b8] sm:$0xff]
        %v1054 = vld [vmem:[%s229 + $0x2c0] sm:$0xff]
        %v1055 = vld [vmem:[%s229 + $0x2c8] sm:$0xff]
        %v1056 = vld [vmem:[%s229 + $0x2d0] sm:$0xff]
        %v1057 = vld [vmem:[%s229 + $0x2d8] sm:$0xff]
        %v1058 = vld [vmem:[%s229 + $0x2e0] sm:$0xff]
        %v1059 = vld [vmem:[%s229 + $0x2e8] sm:$0xff]
        %v1060 = vld [vmem:[%s229 + $0x2f0] sm:$0xff]
        %v1061 = vld [vmem:[%s229 + $0x2f8] sm:$0xff]
        %v1062 = vld [vmem:[%s229 + $0x300] sm:$0xff]
        %v1063 = vld [vmem:[%s229 + $0x308] sm:$0xff]
        %v1064 = vld [vmem:[%s229 + $0x310] sm:$0xff]
        %v1065 = vld [vmem:[%s229 + $0x318] sm:$0xff]
        %v1066 = vld [vmem:[%s229 + $0x320] sm:$0xff]
        %v1067 = vld [vmem:[%s229 + $0x328] sm:$0xff]
        %v1068 = vld [vmem:[%s229 + $0x330] sm:$0xff]
        %v1069 = vld [vmem:[%s229 + $0x338] sm:$0xff]
        %v1070 = vld [vmem:[%s229 + $0x340] sm:$0xff]
        %v1071 = vld [vmem:[%s229 + $0x348] sm:$0xff]
        %v1072 = vld [vmem:[%s229 + $0x350] sm:$0xff]
        %v1073 = vld [vmem:[%s229 + $0x358] sm:$0xff]
        %v1074 = vld [vmem:[%s229 + $0x360] sm:$0xff]
        %v1075 = vld [vmem:[%s229 + $0x368] sm:$0xff]
        %v1076 = vld [vmem:[%s229 + $0x370] sm:$0xff]
        %v1077 = vld [vmem:[%s229 + $0x378] sm:$0xff]
        %v1078 = vld [vmem:[%s229 + $0x380] sm:$0xff]
        %v1079 = vld [vmem:[%s229 + $0x388] sm:$0xff]
        %v1080 = vld [vmem:[%s229 + $0x390] sm:$0xff]
        %v1081 = vld [vmem:[%s229 + $0x398] sm:$0xff]
        %v1082 = vld [vmem:[%s229 + $0x3a0] sm:$0xff]
        %v1083 = vld [vmem:[%s229 + $0x3a8] sm:$0xff]
        %v1084 = vld [vmem:[%s229 + $0x3b0] sm:$0xff]
        %v1085 = vld [vmem:[%s229 + $0x3b8] sm:$0xff]
        %v1086 = vld [vmem:[%s229 + $0x3c0] sm:$0xff]
        %v1087 = vld [vmem:[%s229 + $0x3c8] sm:$0xff]
        %v1088 = vld [vmem:[%s229 + $0x3d0] sm:$0xff]
        %v1089 = vld [vmem:[%s229 + $0x3d8] sm:$0xff]
        %v1090 = vld [vmem:[%s229 + $0x3e0] sm:$0xff]
        %v1091 = vld [vmem:[%s229 + $0x3e8] sm:$0xff]
        %v1092 = vld [vmem:[%s229 + $0x3f0] sm:$0xff]
        %v1093 = vld [vmem:[%s229 + $0x3f8] sm:$0xff]
        %v1094 = vld [vmem:[%s229 + $0x400] sm:$0xff]
        %v1095 = vld [vmem:[%s229 + $0x408] sm:$0xff]
        %v1096 = vld [vmem:[%s229 + $0x410] sm:$0xff]
        %v1097 = vld [vmem:[%s229 + $0x418] sm:$0xff]
        %v1098 = vld [vmem:[%s229 + $0x420] sm:$0xff]
        %v1099 = vld [vmem:[%s229 + $0x428] sm:$0xff]
        %v1100 = vld [vmem:[%s229 + $0x430] sm:$0xff]
        %v1101 = vld [vmem:[%s229 + $0x438] sm:$0xff]
        %v1102 = vld [vmem:[%s229 + $0x440] sm:$0xff]
        %v1103 = vld [vmem:[%s229 + $0x448] sm:$0xff]
        %v1104 = vld [vmem:[%s229 + $0x450] sm:$0xff]
        %v1105 = vld [vmem:[%s229 + $0x458] sm:$0xff]
        %v1106 = vld [vmem:[%s229 + $0x460] sm:$0xff]
        %v1107 = vld [vmem:[%s229 + $0x468] sm:$0xff]
        %v1108 = vld [vmem:[%s229 + $0x470] sm:$0xff]
        %v1109 = vld [vmem:[%s229 + $0x478] sm:$0xff]
        %v1110 = vmul.f32 %v678, 1.1111112
        %v1111 = vmul.f32 %v679, 1.1111112
        %v1112 = vmul.f32 %v680, 1.1111112
        %v1113 = vmul.f32 %v681, 1.1111112
        %v1114 = vmul.f32 %v682, 1.1111112
        %v1115 = vmul.f32 %v683, 1.1111112
        %v1116 = vmul.f32 %v684, 1.1111112
        %v1117 = vmul.f32 %v685, 1.1111112
        %v1118 = vmul.f32 %v686, 1.1111112
        %v1119 = vmul.f32 %v687, 1.1111112
        %v1120 = vmul.f32 %v688, 1.1111112
        %v1121 = vmul.f32 %v689, 1.1111112
        %v1122 = vmul.f32 %v690, 1.1111112
        %v1123 = vmul.f32 %v691, 1.1111112
        %v1124 = vmul.f32 %v692, 1.1111112
        %v1125 = vmul.f32 %v693, 1.1111112
        %v1126 = vmul.f32 %v694, 1.1111112
        %v1127 = vmul.f32 %v695, 1.1111112
        %v1128 = vmul.f32 %v696, 1.1111112
        %v1129 = vmul.f32 %v697, 1.1111112
        %v1130 = vmul.f32 %v698, 1.1111112
        %v1131 = vmul.f32 %v699, 1.1111112
        %v1132 = vmul.f32 %v700, 1.1111112
        %v1133 = vmul.f32 %v701, 1.1111112
        %v1134 = vmul.f32 %v702, 1.1111112
        %v1135 = vmul.f32 %v703, 1.1111112
        %v1136 = vmul.f32 %v704, 1.1111112
        %v1137 = vmul.f32 %v705, 1.1111112
        %v1138 = vmul.f32 %v706, 1.1111112
        %v1139 = vmul.f32 %v707, 1.1111112
        %v1140 = vmul.f32 %v708, 1.1111112
        %v1141 = vmul.f32 %v709, 1.1111112
        %v1142 = vmul.f32 %v710, 1.1111112
        %v1143 = vmul.f32 %v711, 1.1111112
        %v1144 = vmul.f32 %v712, 1.1111112
        %v1145 = vmul.f32 %v713, 1.1111112
        %v1146 = vmul.f32 %v714, 1.1111112
        %v1147 = vmul.f32 %v715, 1.1111112
        %v1148 = vmul.f32 %v716, 1.1111112
        %v1149 = vmul.f32 %v717, 1.1111112
        %v1150 = vmul.f32 %v718, 1.1111112
        %v1151 = vmul.f32 %v719, 1.1111112
        %v1152 = vmul.f32 %v720, 1.1111112
        %v1153 = vmul.f32 %v721, 1.1111112
        %v1154 = vmul.f32 %v722, 1.1111112
        %v1155 = vmul.f32 %v723, 1.1111112
        %v1156 = vmul.f32 %v724, 1.1111112
        %v1157 = vmul.f32 %v725, 1.1111112
        %v1158 = vmul.f32 %v726, 1.1111112
        %v1159 = vmul.f32 %v727, 1.1111112
        %v1160 = vmul.f32 %v728, 1.1111112
        %v1161 = vmul.f32 %v729, 1.1111112
        %v1162 = vmul.f32 %v730, 1.1111112
        %v1163 = vmul.f32 %v731, 1.1111112
        %v1164 = vmul.f32 %v732, 1.1111112
        %v1165 = vmul.f32 %v733, 1.1111112
        %v1166 = vmul.f32 %v734, 1.1111112
        %v1167 = vmul.f32 %v735, 1.1111112
        %v1168 = vmul.f32 %v736, 1.1111112
        %v1169 = vmul.f32 %v737, 1.1111112
        %v1170 = vmul.f32 %v738, 1.1111112
        %v1171 = vmul.f32 %v739, 1.1111112
        %v1172 = vmul.f32 %v740, 1.1111112
        %v1173 = vmul.f32 %v741, 1.1111112
        %v1174 = vmul.f32 %v742, 1.1111112
        %v1175 = vmul.f32 %v743, 1.1111112
        %v1176 = vmul.f32 %v744, 1.1111112
        %v1177 = vmul.f32 %v745, 1.1111112
        %v1178 = vmul.f32 %v746, 1.1111112
        %v1179 = vmul.f32 %v747, 1.1111112
        %v1180 = vmul.f32 %v748, 1.1111112
        %v1181 = vmul.f32 %v749, 1.1111112
        %v1182 = vmul.f32 %v750, 1.1111112
        %v1183 = vmul.f32 %v751, 1.1111112
        %v1184 = vmul.f32 %v752, 1.1111112
        %v1185 = vmul.f32 %v753, 1.1111112
        %v1186 = vmul.f32 %v754, 1.1111112
        %v1187 = vmul.f32 %v755, 1.1111112
        %v1188 = vmul.f32 %v756, 1.1111112
        %v1189 = vmul.f32 %v757, 1.1111112
        %v1190 = vmul.f32 %v758, 1.1111112
        %v1191 = vmul.f32 %v759, 1.1111112
        %v1192 = vmul.f32 %v760, 1.1111112
        %v1193 = vmul.f32 %v761, 1.1111112
        %v1194 = vmul.f32 %v762, 1.1111112
        %v1195 = vmul.f32 %v763, 1.1111112
        %v1196 = vmul.f32 %v764, 1.1111112
        %v1197 = vmul.f32 %v765, 1.1111112
        %v1198 = vmul.f32 %v766, 1.1111112
        %v1199 = vmul.f32 %v767, 1.1111112
        %v1200 = vmul.f32 %v768, 1.1111112
        %v1201 = vmul.f32 %v769, 1.1111112
        %v1202 = vmul.f32 %v770, 1.1111112
        %v1203 = vmul.f32 %v771, 1.1111112
        %v1204 = vmul.f32 %v772, 1.1111112
        %v1205 = vmul.f32 %v773, 1.1111112
        %v1206 = vmul.f32 %v774, 1.1111112
        %v1207 = vmul.f32 %v775, 1.1111112
        %v1208 = vmul.f32 %v776, 1.1111112
        %v1209 = vmul.f32 %v777, 1.1111112
        %v1210 = vmul.f32 %v778, 1.1111112
        %v1211 = vmul.f32 %v779, 1.1111112
        %v1212 = vmul.f32 %v780, 1.1111112
        %v1213 = vmul.f32 %v781, 1.1111112
        %v1214 = vmul.f32 %v782, 1.1111112
        %v1215 = vmul.f32 %v783, 1.1111112
        %v1216 = vmul.f32 %v784, 1.1111112
        %v1217 = vmul.f32 %v785, 1.1111112
        %v1218 = vmul.f32 %v786, 1.1111112
        %v1219 = vmul.f32 %v787, 1.1111112
        %v1220 = vmul.f32 %v788, 1.1111112
        %v1221 = vmul.f32 %v789, 1.1111112
        %v1222 = vmul.f32 %v790, 1.1111112
        %v1223 = vmul.f32 %v791, 1.1111112
        %v1224 = vmul.f32 %v792, 1.1111112
        %v1225 = vmul.f32 %v793, 1.1111112
        %v1226 = vmul.f32 %v794, 1.1111112
        %v1227 = vmul.f32 %v795, 1.1111112
        %v1228 = vmul.f32 %v796, 1.1111112
        %v1229 = vmul.f32 %v797, 1.1111112
        %v1230 = vmul.f32 %v798, 1.1111112
        %v1231 = vmul.f32 %v799, 1.1111112
        %v1232 = vmul.f32 %v800, 1.1111112
        %v1233 = vmul.f32 %v801, 1.1111112
        %v1234 = vmul.f32 %v802, 1.1111112
        %v1235 = vmul.f32 %v803, 1.1111112
        %v1236 = vmul.f32 %v804, 1.1111112
        %v1237 = vmul.f32 %v805, 1.1111112
        %v1238 = vmul.f32 %v806, 1.1111112
        %v1239 = vmul.f32 %v807, 1.1111112
        %v1240 = vmul.f32 %v808, 1.1111112
        %v1241 = vmul.f32 %v809, 1.1111112
        %v1242 = vmul.f32 %v810, 1.1111112
        %v1243 = vmul.f32 %v811, 1.1111112
        %v1244 = vmul.f32 %v812, 1.1111112
        %v1245 = vmul.f32 %v813, 1.1111112
        %v1246 = vmul.f32 %v814, 1.1111112
        %v1247 = vmul.f32 %v815, 1.1111112
        %v1248 = vmul.f32 %v816, 1.1111112
        %v1249 = vmul.f32 %v817, 1.1111112
        %v1250 = vmul.f32 %v818, 1.1111112
        %v1251 = vmul.f32 %v819, 1.1111112
        %v1252 = vmul.f32 %v820, 1.1111112
        %v1253 = vmul.f32 %v821, 1.1111112
        %v1254 = vmul.f32 %v966, %v1110
        %v1255 = vmul.f32 %v967, %v1111
        %v1256 = vmul.f32 %v968, %v1112
        %v1257 = vmul.f32 %v969, %v1113
        %v1258 = vmul.f32 %v970, %v1114
        %v1259 = vmul.f32 %v971, %v1115
        %v1260 = vmul.f32 %v972, %v1116
        %v1261 = vmul.f32 %v973, %v1117
        %v1262 = vmul.f32 %v974, %v1118
        %v1263 = vmul.f32 %v975, %v1119
        %v1264 = vmul.f32 %v976, %v1120
        %v1265 = vmul.f32 %v977, %v1121
        %v1266 = vmul.f32 %v978, %v1122
        %v1267 = vmul.f32 %v979, %v1123
        %v1268 = vmul.f32 %v980, %v1124
        %v1269 = vmul.f32 %v981, %v1125
        %v1270 = vmul.f32 %v982, %v1126
        %v1271 = vmul.f32 %v983, %v1127
        %v1272 = vmul.f32 %v984, %v1128
        %v1273 = vmul.f32 %v985, %v1129
        %v1274 = vmul.f32 %v986, %v1130
        %v1275 = vmul.f32 %v987, %v1131
        %v1276 = vmul.f32 %v988, %v1132
        %v1277 = vmul.f32 %v989, %v1133
        %v1278 = vmul.f32 %v990, %v1134
        %v1279 = vmul.f32 %v991, %v1135
        %v1280 = vmul.f32 %v992, %v1136
        %v1281 = vmul.f32 %v993, %v1137
        %v1282 = vmul.f32 %v994, %v1138
        %v1283 = vmul.f32 %v995, %v1139
        %v1284 = vmul.f32 %v996, %v1140
        %v1285 = vmul.f32 %v997, %v1141
        %v1286 = vmul.f32 %v998, %v1142
        %v1287 = vmul.f32 %v999, %v1143
        %v1288 = vmul.f32 %v1000, %v1144
        %v1289 = vmul.f32 %v1001, %v1145
        %v1290 = vmul.f32 %v1002, %v1146
        %v1291 = vmul.f32 %v1003, %v1147
        %v1292 = vmul.f32 %v1004, %v1148
        %v1293 = vmul.f32 %v1005, %v1149
        %v1294 = vmul.f32 %v1006, %v1150
        %v1295 = vmul.f32 %v1007, %v1151
        %v1296 = vmul.f32 %v1008, %v1152
        %v1297 = vmul.f32 %v1009, %v1153
        %v1298 = vmul.f32 %v1010, %v1154
        %v1299 = vmul.f32 %v1011, %v1155
        %v1300 = vmul.f32 %v1012, %v1156
        %v1301 = vmul.f32 %v1013, %v1157
        %v1302 = vmul.f32 %v1014, %v1158
        %v1303 = vmul.f32 %v1015, %v1159
        %v1304 = vmul.f32 %v1016, %v1160
        %v1305 = vmul.f32 %v1017, %v1161
        %v1306 = vmul.f32 %v1018, %v1162
        %v1307 = vmul.f32 %v1019, %v1163
        %v1308 = vmul.f32 %v1020, %v1164
        %v1309 = vmul.f32 %v1021, %v1165
        %v1310 = vmul.f32 %v1022, %v1166
        %v1311 = vmul.f32 %v1023, %v1167
        %v1312 = vmul.f32 %v1024, %v1168
        %v1313 = vmul.f32 %v1025, %v1169
        %v1314 = vmul.f32 %v1026, %v1170
        %v1315 = vmul.f32 %v1027, %v1171
        %v1316 = vmul.f32 %v1028, %v1172
        %v1317 = vmul.f32 %v1029, %v1173
        %v1318 = vmul.f32 %v1030, %v1174
        %v1319 = vmul.f32 %v1031, %v1175
        %v1320 = vmul.f32 %v1032, %v1176
        %v1321 = vmul.f32 %v1033, %v1177
        %v1322 = vmul.f32 %v1034, %v1178
        %v1323 = vmul.f32 %v1035, %v1179
        %v1324 = vmul.f32 %v1036, %v1180
        %v1325 = vmul.f32 %v1037, %v1181
        %v1326 = vmul.f32 %v1038, %v1182
        %v1327 = vmul.f32 %v1039, %v1183
        %v1328 = vmul.f32 %v1040, %v1184
        %v1329 = vmul.f32 %v1041, %v1185
        %v1330 = vmul.f32 %v1042, %v1186
        %v1331 = vmul.f32 %v1043, %v1187
        %v1332 = vmul.f32 %v1044, %v1188
        %v1333 = vmul.f32 %v1045, %v1189
        %v1334 = vmul.f32 %v1046, %v1190
        %v1335 = vmul.f32 %v1047, %v1191
        %v1336 = vmul.f32 %v1048, %v1192
        %v1337 = vmul.f32 %v1049, %v1193
        %v1338 = vmul.f32 %v1050, %v1194
        %v1339 = vmul.f32 %v1051, %v1195
        %v1340 = vmul.f32 %v1052, %v1196
        %v1341 = vmul.f32 %v1053, %v1197
        %v1342 = vmul.f32 %v1054, %v1198
        %v1343 = vmul.f32 %v1055, %v1199
        %v1344 = vmul.f32 %v1056, %v1200
        %v1345 = vmul.f32 %v1057, %v1201
        %v1346 = vmul.f32 %v1058, %v1202
        %v1347 = vmul.f32 %v1059, %v1203
        %v1348 = vmul.f32 %v1060, %v1204
        %v1349 = vmul.f32 %v1061, %v1205
        %v1350 = vmul.f32 %v1062, %v1206
        %v1351 = vmul.f32 %v1063, %v1207
        %v1352 = vmul.f32 %v1064, %v1208
        %v1353 = vmul.f32 %v1065, %v1209
        %v1354 = vmul.f32 %v1066, %v1210
        %v1355 = vmul.f32 %v1067, %v1211
        %v1356 = vmul.f32 %v1068, %v1212
        %v1357 = vmul.f32 %v1069, %v1213
        %v1358 = vmul.f32 %v1070, %v1214
        %v1359 = vmul.f32 %v1071, %v1215
        %v1360 = vmul.f32 %v1072, %v1216
        %v1361 = vmul.f32 %v1073, %v1217
        %v1362 = vmul.f32 %v1074, %v1218
        %v1363 = vmul.f32 %v1075, %v1219
        %v1364 = vmul.f32 %v1076, %v1220
        %v1365 = vmul.f32 %v1077, %v1221
        %v1366 = vmul.f32 %v1078, %v1222
        %v1367 = vmul.f32 %v1079, %v1223
        %v1368 = vmul.f32 %v1080, %v1224
        %v1369 = vmul.f32 %v1081, %v1225
        %v1370 = vmul.f32 %v1082, %v1226
        %v1371 = vmul.f32 %v1083, %v1227
        %v1372 = vmul.f32 %v1084, %v1228
        %v1373 = vmul.f32 %v1085, %v1229
        %v1374 = vmul.f32 %v1086, %v1230
        %v1375 = vmul.f32 %v1087, %v1231
        %v1376 = vmul.f32 %v1088, %v1232
        %v1377 = vmul.f32 %v1089, %v1233
        %v1378 = vmul.f32 %v1090, %v1234
        %v1379 = vmul.f32 %v1091, %v1235
        %v1380 = vmul.f32 %v1092, %v1236
        %v1381 = vmul.f32 %v1093, %v1237
        %v1382 = vmul.f32 %v1094, %v1238
        %v1383 = vmul.f32 %v1095, %v1239
        %v1384 = vmul.f32 %v1096, %v1240
        %v1385 = vmul.f32 %v1097, %v1241
        %v1386 = vmul.f32 %v1098, %v1242
        %v1387 = vmul.f32 %v1099, %v1243
        %v1388 = vmul.f32 %v1100, %v1244
        %v1389 = vmul.f32 %v1101, %v1245
        %v1390 = vmul.f32 %v1102, %v1246
        %v1391 = vmul.f32 %v1103, %v1247
        %v1392 = vmul.f32 %v1104, %v1248
        %v1393 = vmul.f32 %v1105, %v1249
        %v1394 = vmul.f32 %v1106, %v1250
        %v1395 = vmul.f32 %v1107, %v1251
        %v1396 = vmul.f32 %v1108, %v1252
        %v1397 = vmul.f32 %v1109, %v1253
        %v1398 = vadd.f32 %v822, %v1254
        %v1399 = vadd.f32 %v823, %v1255
        %v1400 = vadd.f32 %v824, %v1256
        %v1401 = vadd.f32 %v825, %v1257
        %v1402 = vadd.f32 %v826, %v1258
        %v1403 = vadd.f32 %v827, %v1259
        %v1404 = vadd.f32 %v828, %v1260
        %v1405 = vadd.f32 %v829, %v1261
        %v1406 = vadd.f32 %v830, %v1262
        %v1407 = vadd.f32 %v831, %v1263
        %v1408 = vadd.f32 %v832, %v1264
        %v1409 = vadd.f32 %v833, %v1265
        %v1410 = vadd.f32 %v834, %v1266
        %v1411 = vadd.f32 %v835, %v1267
        %v1412 = vadd.f32 %v836, %v1268
        %v1413 = vadd.f32 %v837, %v1269
        %v1414 = vadd.f32 %v838, %v1270
        %v1415 = vadd.f32 %v839, %v1271
        %v1416 = vadd.f32 %v840, %v1272
        %v1417 = vadd.f32 %v841, %v1273
        %v1418 = vadd.f32 %v842, %v1274
        %v1419 = vadd.f32 %v843, %v1275
        %v1420 = vadd.f32 %v844, %v1276
        %v1421 = vadd.f32 %v845, %v1277
        %v1422 = vadd.f32 %v846, %v1278
        %v1423 = vadd.f32 %v847, %v1279
        %v1424 = vadd.f32 %v848, %v1280
        %v1425 = vadd.f32 %v849, %v1281
        %v1426 = vadd.f32 %v850, %v1282
        %v1427 = vadd.f32 %v851, %v1283
        %v1428 = vadd.f32 %v852, %v1284
        %v1429 = vadd.f32 %v853, %v1285
        %v1430 = vadd.f32 %v854, %v1286
        %v1431 = vadd.f32 %v855, %v1287
        %v1432 = vadd.f32 %v856, %v1288
        %v1433 = vadd.f32 %v857, %v1289
        %v1434 = vadd.f32 %v858, %v1290
        %v1435 = vadd.f32 %v859, %v1291
        %v1436 = vadd.f32 %v860, %v1292
        %v1437 = vadd.f32 %v861, %v1293
        %v1438 = vadd.f32 %v862, %v1294
        %v1439 = vadd.f32 %v863, %v1295
        %v1440 = vadd.f32 %v864, %v1296
        %v1441 = vadd.f32 %v865, %v1297
        %v1442 = vadd.f32 %v866, %v1298
        %v1443 = vadd.f32 %v867, %v1299
        %v1444 = vadd.f32 %v868, %v1300
        %v1445 = vadd.f32 %v869, %v1301
        %v1446 = vadd.f32 %v870, %v1302
        %v1447 = vadd.f32 %v871, %v1303
        %v1448 = vadd.f32 %v872, %v1304
        %v1449 = vadd.f32 %v873, %v1305
        %v1450 = vadd.f32 %v874, %v1306
        %v1451 = vadd.f32 %v875, %v1307
        %v1452 = vadd.f32 %v876, %v1308
        %v1453 = vadd.f32 %v877, %v1309
        %v1454 = vadd.f32 %v878, %v1310
        %v1455 = vadd.f32 %v879, %v1311
        %v1456 = vadd.f32 %v880, %v1312
        %v1457 = vadd.f32 %v881, %v1313
        %v1458 = vadd.f32 %v882, %v1314
        %v1459 = vadd.f32 %v883, %v1315
        %v1460 = vadd.f32 %v884, %v1316
        %v1461 = vadd.f32 %v885, %v1317
        %v1462 = vadd.f32 %v886, %v1318
        %v1463 = vadd.f32 %v887, %v1319
        %v1464 = vadd.f32 %v888, %v1320
        %v1465 = vadd.f32 %v889, %v1321
        %v1466 = vadd.f32 %v890, %v1322
        %v1467 = vadd.f32 %v891, %v1323
        %v1468 = vadd.f32 %v892, %v1324
        %v1469 = vadd.f32 %v893, %v1325
        %v1470 = vadd.f32 %v894, %v1326
        %v1471 = vadd.f32 %v895, %v1327
        %v1472 = vadd.f32 %v896, %v1328
        %v1473 = vadd.f32 %v897, %v1329
        %v1474 = vadd.f32 %v898, %v1330
        %v1475 = vadd.f32 %v899, %v1331
        %v1476 = vadd.f32 %v900, %v1332
        %v1477 = vadd.f32 %v901, %v1333
        %v1478 = vadd.f32 %v902, %v1334
        %v1479 = vadd.f32 %v903, %v1335
        %v1480 = vadd.f32 %v904, %v1336
        %v1481 = vadd.f32 %v905, %v1337
        %v1482 = vadd.f32 %v906, %v1338
        %v1483 = vadd.f32 %v907, %v1339
        %v1484 = vadd.f32 %v908, %v1340
        %v1485 = vadd.f32 %v909, %v1341
        %v1486 = vadd.f32 %v910, %v1342
        %v1487 = vadd.f32 %v911, %v1343
        %v1488 = vadd.f32 %v912, %v1344
        %v1489 = vadd.f32 %v913, %v1345
        %v1490 = vadd.f32 %v914, %v1346
        %v1491 = vadd.f32 %v915, %v1347
        %v1492 = vadd.f32 %v916, %v1348
        %v1493 = vadd.f32 %v917, %v1349
        %v1494 = vadd.f32 %v918, %v1350
        %v1495 = vadd.f32 %v919, %v1351
        %v1496 = vadd.f32 %v920, %v1352
        %v1497 = vadd.f32 %v921, %v1353
        %v1498 = vadd.f32 %v922, %v1354
        %v1499 = vadd.f32 %v923, %v1355
        %v1500 = vadd.f32 %v924, %v1356
        %v1501 = vadd.f32 %v925, %v1357
        %v1502 = vadd.f32 %v926, %v1358
        %v1503 = vadd.f32 %v927, %v1359
        %v1504 = vadd.f32 %v928, %v1360
        %v1505 = vadd.f32 %v929, %v1361
        %v1506 = vadd.f32 %v930, %v1362
        %v1507 = vadd.f32 %v931, %v1363
        %v1508 = vadd.f32 %v932, %v1364
        %v1509 = vadd.f32 %v933, %v1365
        %v1510 = vadd.f32 %v934, %v1366
        %v1511 = vadd.f32 %v935, %v1367
        %v1512 = vadd.f32 %v936, %v1368
        %v1513 = vadd.f32 %v937, %v1369
        %v1514 = vadd.f32 %v938, %v1370
        %v1515 = vadd.f32 %v939, %v1371
        %v1516 = vadd.f32 %v940, %v1372
        %v1517 = vadd.f32 %v941, %v1373
        %v1518 = vadd.f32 %v942, %v1374
        %v1519 = vadd.f32 %v943, %v1375
        %v1520 = vadd.f32 %v944, %v1376
        %v1521 = vadd.f32 %v945, %v1377
        %v1522 = vadd.f32 %v946, %v1378
        %v1523 = vadd.f32 %v947, %v1379
        %v1524 = vadd.f32 %v948, %v1380
        %v1525 = vadd.f32 %v949, %v1381
        %v1526 = vadd.f32 %v950, %v1382
        %v1527 = vadd.f32 %v951, %v1383
        %v1528 = vadd.f32 %v952, %v1384
        %v1529 = vadd.f32 %v953, %v1385
        %v1530 = vadd.f32 %v954, %v1386
        %v1531 = vadd.f32 %v955, %v1387
        %v1532 = vadd.f32 %v956, %v1388
        %v1533 = vadd.f32 %v957, %v1389
        %v1534 = vadd.f32 %v958, %v1390
        %v1535 = vadd.f32 %v959, %v1391
        %v1536 = vadd.f32 %v960, %v1392
        %v1537 = vadd.f32 %v961, %v1393
        %v1538 = vadd.f32 %v962, %v1394
        %v1539 = vadd.f32 %v963, %v1395
        %v1540 = vadd.f32 %v964, %v1396
        %v1541 = vadd.f32 %v965, %v1397
        %1542 = vst [vmem:[%s244] sm:$0xff] %v1398
        %1543 = vst [vmem:[%s244 + $0x8] sm:$0xff] %v1399
        %1544 = vst [vmem:[%s244 + $0x10] sm:$0xff] %v1400
        %1545 = vst [vmem:[%s244 + $0x18] sm:$0xff] %v1401
        %1546 = vst [vmem:[%s244 + $0x20] sm:$0xff] %v1402
        %1547 = vst [vmem:[%s244 + $0x28] sm:$0xff] %v1403
        %1548 = vst [vmem:[%s244 + $0x30] sm:$0xff] %v1404
        %1549 = vst [vmem:[%s244 + $0x38] sm:$0xff] %v1405
        %1550 = vst [vmem:[%s244 + $0x40] sm:$0xff] %v1406
        %1551 = vst [vmem:[%s244 + $0x48] sm:$0xff] %v1407
        %1552 = vst [vmem:[%s244 + $0x50] sm:$0xff] %v1408
        %1553 = vst [vmem:[%s244 + $0x58] sm:$0xff] %v1409
        %1554 = vst [vmem:[%s244 + $0x60] sm:$0xff] %v1410
        %1555 = vst [vmem:[%s244 + $0x68] sm:$0xff] %v1411
        %1556 = vst [vmem:[%s244 + $0x70] sm:$0xff] %v1412
        %1557 = vst [vmem:[%s244 + $0x78] sm:$0xff] %v1413
        %1558 = vst [vmem:[%s244 + $0x80] sm:$0xff] %v1414
        %1559 = vst [vmem:[%s244 + $0x88] sm:$0xff] %v1415
        %1560 = vst [vmem:[%s244 + $0x90] sm:$0xff] %v1416
        %1561 = vst [vmem:[%s244 + $0x98] sm:$0xff] %v1417
        %1562 = vst [vmem:[%s244 + $0xa0] sm:$0xff] %v1418
        %1563 = vst [vmem:[%s244 + $0xa8] sm:$0xff] %v1419
        %1564 = vst [vmem:[%s244 + $0xb0] sm:$0xff] %v1420
        %1565 = vst [vmem:[%s244 + $0xb8] sm:$0xff] %v1421
        %1566 = vst [vmem:[%s244 + $0xc0] sm:$0xff] %v1422
        %1567 = vst [vmem:[%s244 + $0xc8] sm:$0xff] %v1423
        %1568 = vst [vmem:[%s244 + $0xd0] sm:$0xff] %v1424
        %1569 = vst [vmem:[%s244 + $0xd8] sm:$0xff] %v1425
        %1570 = vst [vmem:[%s244 + $0xe0] sm:$0xff] %v1426
        %1571 = vst [vmem:[%s244 + $0xe8] sm:$0xff] %v1427
        %1572 = vst [vmem:[%s244 + $0xf0] sm:$0xff] %v1428
        %1573 = vst [vmem:[%s244 + $0xf8] sm:$0xff] %v1429
        %1574 = vst [vmem:[%s244 + $0x100] sm:$0xff] %v1430
        %1575 = vst [vmem:[%s244 + $0x108] sm:$0xff] %v1431
        %1576 = vst [vmem:[%s244 + $0x110] sm:$0xff] %v1432
        %1577 = vst [vmem:[%s244 + $0x118] sm:$0xff] %v1433
        %1578 = vst [vmem:[%s244 + $0x120] sm:$0xff] %v1434
        %1579 = vst [vmem:[%s244 + $0x128] sm:$0xff] %v1435
        %1580 = vst [vmem:[%s244 + $0x130] sm:$0xff] %v1436
        %1581 = vst [vmem:[%s244 + $0x138] sm:$0xff] %v1437
        %1582 = vst [vmem:[%s244 + $0x140] sm:$0xff] %v1438
        %1583 = vst [vmem:[%s244 + $0x148] sm:$0xff] %v1439
        %1584 = vst [vmem:[%s244 + $0x150] sm:$0xff] %v1440
        %1585 = vst [vmem:[%s244 + $0x158] sm:$0xff] %v1441
        %1586 = vst [vmem:[%s244 + $0x160] sm:$0xff] %v1442
        %1587 = vst [vmem:[%s244 + $0x168] sm:$0xff] %v1443
        %1588 = vst [vmem:[%s244 + $0x170] sm:$0xff] %v1444
        %1589 = vst [vmem:[%s244 + $0x178] sm:$0xff] %v1445
        %1590 = vst [vmem:[%s244 + $0x180] sm:$0xff] %v1446
        %1591 = vst [vmem:[%s244 + $0x188] sm:$0xff] %v1447
        %1592 = vst [vmem:[%s244 + $0x190] sm:$0xff] %v1448
        %1593 = vst [vmem:[%s244 + $0x198] sm:$0xff] %v1449
        %1594 = vst [vmem:[%s244 + $0x1a0] sm:$0xff] %v1450
        %1595 = vst [vmem:[%s244 + $0x1a8] sm:$0xff] %v1451
        %1596 = vst [vmem:[%s244 + $0x1b0] sm:$0xff] %v1452
        %1597 = vst [vmem:[%s244 + $0x1b8] sm:$0xff] %v1453
        %1598 = vst [vmem:[%s244 + $0x1c0] sm:$0xff] %v1454
        %1599 = vst [vmem:[%s244 + $0x1c8] sm:$0xff] %v1455
        %1600 = vst [vmem:[%s244 + $0x1d0] sm:$0xff] %v1456
        %1601 = vst [vmem:[%s244 + $0x1d8] sm:$0xff] %v1457
        %1602 = vst [vmem:[%s244 + $0x1e0] sm:$0xff] %v1458
        %1603 = vst [vmem:[%s244 + $0x1e8] sm:$0xff] %v1459
        %1604 = vst [vmem:[%s244 + $0x1f0] sm:$0xff] %v1460
        %1605 = vst [vmem:[%s244 + $0x1f8] sm:$0xff] %v1461
        %1606 = vst [vmem:[%s244 + $0x200] sm:$0xff] %v1462
        %1607 = vst [vmem:[%s244 + $0x208] sm:$0xff] %v1463
        %1608 = vst [vmem:[%s244 + $0x210] sm:$0xff] %v1464
        %1609 = vst [vmem:[%s244 + $0x218] sm:$0xff] %v1465
        %1610 = vst [vmem:[%s244 + $0x220] sm:$0xff] %v1466
        %1611 = vst [vmem:[%s244 + $0x228] sm:$0xff] %v1467
        %1612 = vst [vmem:[%s244 + $0x230] sm:$0xff] %v1468
        %1613 = vst [vmem:[%s244 + $0x238] sm:$0xff] %v1469
        %1614 = vst [vmem:[%s244 + $0x240] sm:$0xff] %v1470
        %1615 = vst [vmem:[%s244 + $0x248] sm:$0xff] %v1471
        %1616 = vst [vmem:[%s244 + $0x250] sm:$0xff] %v1472
        %1617 = vst [vmem:[%s244 + $0x258] sm:$0xff] %v1473
        %1618 = vst [vmem:[%s244 + $0x260] sm:$0xff] %v1474
        %1619 = vst [vmem:[%s244 + $0x268] sm:$0xff] %v1475
        %1620 = vst [vmem:[%s244 + $0x270] sm:$0xff] %v1476
        %1621 = vst [vmem:[%s244 + $0x278] sm:$0xff] %v1477
        %1622 = vst [vmem:[%s244 + $0x280] sm:$0xff] %v1478
        %1623 = vst [vmem:[%s244 + $0x288] sm:$0xff] %v1479
        %1624 = vst [vmem:[%s244 + $0x290] sm:$0xff] %v1480
        %1625 = vst [vmem:[%s244 + $0x298] sm:$0xff] %v1481
        %1626 = vst [vmem:[%s244 + $0x2a0] sm:$0xff] %v1482
        %1627 = vst [vmem:[%s244 + $0x2a8] sm:$0xff] %v1483
        %1628 = vst [vmem:[%s244 + $0x2b0] sm:$0xff] %v1484
        %1629 = vst [vmem:[%s244 + $0x2b8] sm:$0xff] %v1485
        %1630 = vst [vmem:[%s244 + $0x2c0] sm:$0xff] %v1486
        %1631 = vst [vmem:[%s244 + $0x2c8] sm:$0xff] %v1487
        %1632 = vst [vmem:[%s244 + $0x2d0] sm:$0xff] %v1488
        %1633 = vst [vmem:[%s244 + $0x2d8] sm:$0xff] %v1489
        %1634 = vst [vmem:[%s244 + $0x2e0] sm:$0xff] %v1490
        %1635 = vst [vmem:[%s244 + $0x2e8] sm:$0xff] %v1491
        %1636 = vst [vmem:[%s244 + $0x2f0] sm:$0xff] %v1492
        %1637 = vst [vmem:[%s244 + $0x2f8] sm:$0xff] %v1493
        %1638 = vst [vmem:[%s244 + $0x300] sm:$0xff] %v1494
        %1639 = vst [vmem:[%s244 + $0x308] sm:$0xff] %v1495
        %1640 = vst [vmem:[%s244 + $0x310] sm:$0xff] %v1496
        %1641 = vst [vmem:[%s244 + $0x318] sm:$0xff] %v1497
        %1642 = vst [vmem:[%s244 + $0x320] sm:$0xff] %v1498
        %1643 = vst [vmem:[%s244 + $0x328] sm:$0xff] %v1499
        %1644 = vst [vmem:[%s244 + $0x330] sm:$0xff] %v1500
        %1645 = vst [vmem:[%s244 + $0x338] sm:$0xff] %v1501
        %1646 = vst [vmem:[%s244 + $0x340] sm:$0xff] %v1502
        %1647 = vst [vmem:[%s244 + $0x348] sm:$0xff] %v1503
        %1648 = vst [vmem:[%s244 + $0x350] sm:$0xff] %v1504
        %1649 = vst [vmem:[%s244 + $0x358] sm:$0xff] %v1505
        %1650 = vst [vmem:[%s244 + $0x360] sm:$0xff] %v1506
        %1651 = vst [vmem:[%s244 + $0x368] sm:$0xff] %v1507
        %1652 = vst [vmem:[%s244 + $0x370] sm:$0xff] %v1508
        %1653 = vst [vmem:[%s244 + $0x378] sm:$0xff] %v1509
        %1654 = vst [vmem:[%s244 + $0x380] sm:$0xff] %v1510
        %1655 = vst [vmem:[%s244 + $0x388] sm:$0xff] %v1511
        %1656 = vst [vmem:[%s244 + $0x390] sm:$0xff] %v1512
        %1657 = vst [vmem:[%s244 + $0x398] sm:$0xff] %v1513
        %1658 = vst [vmem:[%s244 + $0x3a0] sm:$0xff] %v1514
        %1659 = vst [vmem:[%s244 + $0x3a8] sm:$0xff] %v1515
        %1660 = vst [vmem:[%s244 + $0x3b0] sm:$0xff] %v1516
        %1661 = vst [vmem:[%s244 + $0x3b8] sm:$0xff] %v1517
        %1662 = vst [vmem:[%s244 + $0x3c0] sm:$0xff] %v1518
        %1663 = vst [vmem:[%s244 + $0x3c8] sm:$0xff] %v1519
        %1664 = vst [vmem:[%s244 + $0x3d0] sm:$0xff] %v1520
        %1665 = vst [vmem:[%s244 + $0x3d8] sm:$0xff] %v1521
        %1666 = vst [vmem:[%s244 + $0x3e0] sm:$0xff] %v1522
        %1667 = vst [vmem:[%s244 + $0x3e8] sm:$0xff] %v1523
        %1668 = vst [vmem:[%s244 + $0x3f0] sm:$0xff] %v1524
        %1669 = vst [vmem:[%s244 + $0x3f8] sm:$0xff] %v1525
        %1670 = vst [vmem:[%s244 + $0x400] sm:$0xff] %v1526
        %1671 = vst [vmem:[%s244 + $0x408] sm:$0xff] %v1527
        %1672 = vst [vmem:[%s244 + $0x410] sm:$0xff] %v1528
        %1673 = vst [vmem:[%s244 + $0x418] sm:$0xff] %v1529
        %1674 = vst [vmem:[%s244 + $0x420] sm:$0xff] %v1530
        %1675 = vst [vmem:[%s244 + $0x428] sm:$0xff] %v1531
        %1676 = vst [vmem:[%s244 + $0x430] sm:$0xff] %v1532
        %1677 = vst [vmem:[%s244 + $0x438] sm:$0xff] %v1533
        %1678 = vst [vmem:[%s244 + $0x440] sm:$0xff] %v1534
        %1679 = vst [vmem:[%s244 + $0x448] sm:$0xff] %v1535
        %1680 = vst [vmem:[%s244 + $0x450] sm:$0xff] %v1536
        %1681 = vst [vmem:[%s244 + $0x458] sm:$0xff] %v1537
        %1682 = vst [vmem:[%s244 + $0x460] sm:$0xff] %v1538
        %1683 = vst [vmem:[%s244 + $0x468] sm:$0xff] %v1539
        %1684 = vst [vmem:[%s244 + $0x470] sm:$0xff] %v1540
        %1685 = vst [vmem:[%s244 + $0x478] sm:$0xff] %v1541
        %s1686 = smul.u32 24, %s17
        %p1687 = scmp.lt.s32.totalorder %s1686, 47
        %s1688 = scalar_select %p1687, %s1686, 47
        %s1689 = smul.addr %s1688, 6
        %s1690 = smul.addr %s1689, 8
        %s1691 = scalar_lea.vmem %s3, %s1690
        // Predicated region
        $region37: #{dropout_add.1} parent=31 // pred_check
          %p1692 = pneg %p113
        $region38: #{dropout_add.1} parent=31 // pred_check_branch
          %1694 = sbr.rel (%p1692) target = $region40
        $region39: #{dropout_add.1} parent=31 // pred_region
          %s1695 = smul.u32 24, %s17
        $region40: #{dropout_add.1} parent=31 // pred_fallthru
          _
      $region32: #{dropout_add.1} parent=5 // pred_fallthru
        _
      %p1696 = scmp.le.s32.totalorder 2, %s12
      // Predicated region
      $region41: #{dropout_add.1} parent=5 // pred_check
        %p1697 = pneg %p1696
      $region42: #{dropout_add.1} parent=5 // pred_check_branch
        %1699 = sbr.rel (%p1697) target = $region44
      $region43: #{dropout_add.1} parent=5 // pred_region
        %s1700 = ssub.s32 %s12, 2
        // Predicated region
        $region45: #{dropout_add.1} parent=43 // pred_check
          %p1701 = pneg %p119
        $region46: #{dropout_add.1} parent=43 // pred_check_branch
          %1703 = sbr.rel (%p1701) target = $region48
        $region47: #{dropout_add.1} parent=43 // pred_region
          %s1704 = smul.u32 24, %s18
          %p1705 = scmp.lt.s32.totalorder %s1704, 47
          %s1706 = scalar_select %p1705, %s1704, 47
          %s1707 = smul.addr %s1706, 6
          %s1708 = smul.addr %s1707, 8
          %s1709 = scalar_lea.vmem %s3, %s1708
        $region48: #{dropout_add.1} parent=43 // pred_fallthru
          _
      $region44: #{dropout_add.1} parent=5 // pred_fallthru
        _
    $region6: #{dropout_add.1} parent=1 // loop_footer
      %s16 = sadd.s32 1, %s12
    $region7: #{dropout_add.1} parent=1 // loop_footer_branch
      %11 = sbr.rel target = $region3
    $region8: #{dropout_add.1} parent=1 // loop_exit
      _
    %1710 = vsyncpa [#allocation3], 1
    %s1711 = scalar_lea.sflag [#allocation3], 1
    %1712 = vsyncpa %s1711, 1

</llo_original>
